<compile_context>
chip_gen: v7x
topology: tpu7x:2x2x1
jax: 0.10.0
libtpu: 0.0.40
codegen_flags: <defaults>
</compile_context>

<pallas_src>
import math

import jax
import jax.numpy as jnp
from jax.experimental import pallas as pl
from jax.experimental.pallas import tpu as pltpu

HI = jax.lax.Precision.HIGHEST   # used only by the pure-JAX reference


def mha_kernel(q_ref, k_ref, v_ref, bias_ref, cos_ref, sinf_ref,
               wqT_ref, wqTf_ref, wkT_ref, wkTf_ref, wvT_ref,
               wfcT_ref, bfc_ref, o_ref, kp_ref, vp_ref):
    """grid = (batch, q_block); one (batch, q-tile) per step.

    q_ref             : (1, H, TQ, D) bf16  queries for this q-tile
    k_ref, v_ref      : (1, H, L,  D) bf16  full keys / values of this batch
    bias_ref          : (1, 1, TQ, L) bf16  additive mask (-1e20 masked, 0 else)
    cos_ref, sinf_ref : (L, D) f32          cos table, flip(sin, -1) table
    wqT/wkT/wvT       : (D, D) bf16         pre-transposed Linear weights
    wqTf/wkTf         : (D, D) bf16         row-flipped wqT/wkT (folded flip)
    wfcT_ref          : (H, D, E) bf16      fc_out weight, transposed+reshaped
    bfc_ref           : (1, E) f32
    o_ref             : (1, TQ, E) f32
    kp_ref, vp_ref    : (H, L, D) bf16 VMEM scratch (per-batch projected K/V)
    """
    _, H, TQ, D = q_ref.shape
    L = k_ref.shape[2]
    E = o_ref.shape[2]
    qb = pl.program_id(1)
    bf16 = jnp.bfloat16
    f32 = jnp.float32

    inv_scale = 1.0 / math.sqrt(float(E))   # PyTorch divides by sqrt(embed_size)

    # ---- per-batch K/V rotary + projection (hoisted out of the q loop) ----
    @pl.when(qb == 0)
    def _():
        cos = cos_ref[...]                   # (L, D)
        sinf = sinf_ref[...]                 # (L, D) == flip(sin, -1)
        k3 = k_ref[0].astype(f32)            # (H, L, D)
        kc = (k3 * cos[None]).reshape(H * L, D).astype(bf16)
        ks = (k3 * sinf[None]).reshape(H * L, D).astype(bf16)
        kp = (jnp.dot(kc, wkT_ref[...], preferred_element_type=f32)
              + jnp.dot(ks, wkTf_ref[...], preferred_element_type=f32))
        vp = jnp.dot(v_ref[0].reshape(H * L, D), wvT_ref[...],
                     preferred_element_type=f32)
        kp_ref[...] = kp.reshape(H, L, D).astype(bf16)
        vp_ref[...] = vp.reshape(H, L, D).astype(bf16)

    # ---- per-q-tile rotary (f32 elementwise) + merged-head Q projection ----
    q0 = pl.multiple_of(qb * TQ, TQ)
    cos_q = cos_ref[pl.ds(q0, TQ), :]        # rows of this q-tile
    sinf_q = sinf_ref[pl.ds(q0, TQ), :]
    q3 = q_ref[0].astype(f32)                # (H, TQ, D)
    qc = (q3 * cos_q[None]).reshape(H * TQ, D).astype(bf16)
    qs = (q3 * sinf_q[None]).reshape(H * TQ, D).astype(bf16)
    qp = (jnp.dot(qc, wqT_ref[...], preferred_element_type=f32)
          + jnp.dot(qs, wqTf_ref[...], preferred_element_type=f32))
    qp3 = qp.reshape(H, TQ, D).astype(bf16)

    kp3 = kp_ref[...]                        # (H, L, D) bf16, resident per batch
    vp3 = vp_ref[...]

    # ---- scores, additive mask, softmax (f32 math, bf16 MXU operands) ----
    energy = jnp.einsum('hqd,hkd->hqk', qp3, kp3,
                        preferred_element_type=f32)           # (H, TQ, L)
    bias = bias_ref[0, 0].astype(f32)                         # (TQ, L)
    # additive -1e20 before scaling: numerically identical to masked_fill
    e = (energy + bias[None]) * inv_scale
    m = jnp.max(e, axis=-1, keepdims=True)
    p = jnp.exp(e - m)
    att = (p * pl.reciprocal(jnp.sum(p, axis=-1, keepdims=True),
                             approx=True)).astype(bf16)

    outh = jnp.einsum('hqk,hkd->hqd', att, vp3,
                      preferred_element_type=f32)             # (H, TQ, D)

    # ---- fc_out: sum_h out_h @ wfc.T[hD:(h+1)D, :], accumulated in vregs ----
    acc = jnp.zeros((TQ, E), f32)
    for h in range(H):                       # H small & static -> unrolled
        acc = acc + jnp.dot(outh[h].astype(bf16), wfcT_ref[h],
                            preferred_element_type=f32)
    o_ref[0] = (acc + bfc_ref[...]).astype(o_ref.dtype)


def make_rotary_tables(seq_len, head_dim):
    # TODO(synk): the PyTorch RotaryPositionalEmbedding builds (L, D/2) tables
    # but its einsum expects last-dim D; we implement the intended rotation by
    # tiling the tables to (L, D) and applying x*cos + flip(x,-1)*sin per head.
    inv_freq = 1.0 / (10000.0 ** (jnp.arange(0.0, head_dim, 2.0) / head_dim))
    t = jnp.arange(seq_len, dtype=jnp.float32)
    freqs = jnp.einsum('i,j->ij', t, inv_freq)            # (L, D/2)
    cos = jnp.concatenate([jnp.cos(freqs)] * 2, axis=-1)  # (L, D)
    sin = jnp.concatenate([jnp.sin(freqs)] * 2, axis=-1)
    return cos.astype(jnp.float32), sin.astype(jnp.float32)


def mha_pallas(values, keys, queries, mask, wq, wk, wv, wfc, bfc, heads,
               *, tile_q=None):
    N, L, E = queries.shape
    H = heads
    D = E // H
    assert H * D == E, "embed_size not divisible by heads"
    if tile_q is None:
        tile_q = min(128, L)
    assert L % 8 == 0 and L % tile_q == 0
    assert tile_q % 16 == 0 or tile_q == L   # bf16 sublane packing
    QB = L // tile_q
    bf16 = jnp.bfloat16

    def split_heads(x):
        # (N, L, E) -> (N, H, L, D), bf16 (halves DMA + resident VMEM)
        return x.reshape(N, L, H, D).transpose(0, 2, 1, 3).astype(bf16)

    q4, k4, v4 = split_heads(queries), split_heads(keys), split_heads(values)

    cos, sin = make_rotary_tables(L, D)
    sin_flip = jnp.flip(sin, axis=-1)

    # nn.Linear computes y = x @ W.T -> pass pre-transposed weights (bf16
    # operands, f32 accumulation happens in the kernel).  The rotary flip is
    # folded into the row-flipped copies of wq.T / wk.T.
    wqT = wq.T.astype(bf16)
    wqTf = jnp.flip(wq.T, axis=0).astype(bf16)
    wkT = wk.T.astype(bf16)
    wkTf = jnp.flip(wk.T, axis=0).astype(bf16)
    wvT = wv.T.astype(bf16)
    wfcT_r = wfc.T.reshape(H, D, E).astype(bf16)   # [h, d, e] = wfc[e, h*D + d]
    bfc2 = bfc.reshape(1, E).astype(jnp.float32)

    # Additive mask bias: -1e20 where mask == 0, else 0.  Do NOT broadcast over
    # the batch unless the caller's mask is batch-dependent.
    # TODO(synk): per-head masks (mask.shape[1] == H) are not supported here.
    mask = jnp.asarray(mask)
    mask4 = jnp.broadcast_to(mask, jnp.broadcast_shapes(mask.shape, (1, 1, L, L)))
    assert mask4.ndim == 4 and mask4.shape[1] == 1 and mask4.shape[0] in (1, N)
    bias = jnp.where(mask4 == 0, jnp.float32(-1e20), jnp.float32(0.0)).astype(bf16)
    if mask4.shape[0] == 1:
        bias_ix = lambda n, qb: (0, 0, qb, 0)
    else:
        bias_ix = lambda n, qb: (n, 0, qb, 0)

    return pl.pallas_call(
        mha_kernel,
        out_shape=jax.ShapeDtypeStruct((N, L, E), jnp.float32),
        grid_spec=pltpu.PrefetchScalarGridSpec(
            num_scalar_prefetch=0,
            grid=(N, QB),
            in_specs=[
                pl.BlockSpec((1, H, tile_q, D), lambda n, qb: (n, 0, qb, 0)),  # q
                pl.BlockSpec((1, H, L, D),      lambda n, qb: (n, 0, 0, 0)),   # k
                pl.BlockSpec((1, H, L, D),      lambda n, qb: (n, 0, 0, 0)),   # v
                pl.BlockSpec((1, 1, tile_q, L), bias_ix),                      # mask bias
                pl.BlockSpec((L, D), lambda n, qb: (0, 0)),                    # cos
                pl.BlockSpec((L, D), lambda n, qb: (0, 0)),                    # flip(sin)
                pl.BlockSpec((D, D), lambda n, qb: (0, 0)),                    # wq.T
                pl.BlockSpec((D, D), lambda n, qb: (0, 0)),                    # flip(wq.T,0)
                pl.BlockSpec((D, D), lambda n, qb: (0, 0)),                    # wk.T
                pl.BlockSpec((D, D), lambda n, qb: (0, 0)),                    # flip(wk.T,0)
                pl.BlockSpec((D, D), lambda n, qb: (0, 0)),                    # wv.T
                pl.BlockSpec((H, D, E), lambda n, qb: (0, 0, 0)),              # wfc.T per head
                pl.BlockSpec((1, E), lambda n, qb: (0, 0)),                    # bias
            ],
            out_specs=pl.BlockSpec((1, tile_q, E), lambda n, qb: (n, qb, 0)),
            scratch_shapes=[pltpu.VMEM((H, L, D), bf16),    # projected K (per batch)
                            pltpu.VMEM((H, L, D), bf16)],   # projected V (per batch)
        ),
        compiler_params=pltpu.CompilerParams(
            # q-block axis must be sequential so the per-batch K/V scratch
            # carries across it; batch stays parallel for megacore.
            dimension_semantics=("parallel", "arbitrary"),
            vmem_limit_bytes=64 * 1024 * 1024),
    )(q4, k4, v4, bias, cos, sin_flip,
      wqT, wqTf, wkT, wkTf, wvT, wfcT_r, bfc2)


def mha_reference(values, keys, queries, mask, wq, wk, wv, wfc, bfc, heads):
    """Pure-JAX mirror of the PyTorch forward (same rotary interpretation)."""
    N, L, E = queries.shape
    H = heads
    D = E // H
    cos, sin = make_rotary_tables(L, D)

    def split(x):
        return x.reshape(N, L, H, D)

    q, k, v = split(queries), split(keys), split(values)

    def rope(x):
        return x * cos[None, :, None, :] + jnp.flip(x, -1) * sin[None, :, None, :]

    q, k = rope(q), rope(k)
    q = jnp.einsum('nlhd,ed->nlhe', q, wq, precision=HI)
    k = jnp.einsum('nlhd,ed->nlhe', k, wk, precision=HI)
    v = jnp.einsum('nlhd,ed->nlhe', v, wv, precision=HI)
    energy = jnp.einsum('nqhd,nkhd->nhqk', q, k, precision=HI)
    energy = jnp.where(mask == 0.0, -1e20, energy)
    att = jax.nn.softmax(energy / math.sqrt(float(E)), axis=3)
    out = jnp.einsum('nhql,nlhd->nqhd', att, v, precision=HI).reshape(N, L, E)
    return jnp.einsum('nle,fe->nlf', out, wfc, precision=HI) + bfc[None, None, :]


if __name__ == "__main__":
    N, L, E, H = 2, 32, 32, 4
    D = E // H

    key = jax.random.PRNGKey(0)
    ks = jax.random.split(key, 8)
    values_in = jax.random.normal(ks[0], (N, L, E), jnp.float32)
    keys_in = jax.random.normal(ks[1], (N, L, E), jnp.float32)
    queries_in = jax.random.normal(ks[2], (N, L, E), jnp.float32)
    # causal mask, broadcastable to (N, H, Lq, Lk); batch-independent so the
    # kernel ships it once as (1, 1, L, L).
    mask = jnp.tril(jnp.ones((L, L), jnp.float32))[None, None]

    # deterministic "parameters" (shapes from the module __init__)
    wq = 0.1 * jax.random.normal(ks[3], (D, D), jnp.float32)
    wk = 0.1 * jax.random.normal(ks[4], (D, D), jnp.float32)
    wv = 0.1 * jax.random.normal(ks[5], (D, D), jnp.float32)
    wfc = 0.1 * jax.random.normal(ks[6], (E, E), jnp.float32)
    bfc = 0.1 * jax.random.normal(ks[7], (E,), jnp.float32)

    out = mha_pallas(values_in, keys_in, queries_in, mask,
                     wq, wk, wv, wfc, bfc, H, tile_q=16)   # 2 q-blocks per batch
    out = jax.block_until_ready(out)

    ref = mha_reference(values_in, keys_in, queries_in, mask,
                        wq, wk, wv, wfc, bfc, H)
    ref = jax.block_until_ready(ref)

    assert out.shape == (N, L, E)
    # kernel inputs/matmul operands are bf16 (f32 accumulation); tolerance is
    # sized for bf16 rounding vs the HIGHEST-precision f32 reference.
    assert jnp.allclose(out, ref, rtol=2e-2, atol=2e-2), (
        f"max abs err = {jnp.max(jnp.abs(out - ref))}")
    print("KERNEL_OK")
</pallas_src>

<mosaic_0001>
module attributes {stable_mosaic.version = 11 : i64} {
  func.func @mha_kernel(%arg0: i32, %arg1: i32, %arg2: memref<1x4x16x8xbf16, #tpu.memory_space<vmem>>, %arg3: memref<1x4x32x8xbf16, #tpu.memory_space<vmem>>, %arg4: memref<1x4x32x8xbf16, #tpu.memory_space<vmem>>, %arg5: memref<1x1x16x32xbf16, #tpu.memory_space<vmem>>, %arg6: memref<32x8xf32, #tpu.memory_space<vmem>>, %arg7: memref<32x8xf32, #tpu.memory_space<vmem>>, %arg8: memref<8x8xbf16, #tpu.memory_space<vmem>>, %arg9: memref<8x8xbf16, #tpu.memory_space<vmem>>, %arg10: memref<8x8xbf16, #tpu.memory_space<vmem>>, %arg11: memref<8x8xbf16, #tpu.memory_space<vmem>>, %arg12: memref<8x8xbf16, #tpu.memory_space<vmem>>, %arg13: memref<4x8x32xbf16, #tpu.memory_space<vmem>>, %arg14: memref<1x32xf32, #tpu.memory_space<vmem>>, %arg15: memref<1x16x32xf32, #tpu.memory_space<vmem>>, %arg16: memref<4x32x8xbf16, #tpu.memory_space<vmem>>, %arg17: memref<4x32x8xbf16, #tpu.memory_space<vmem>>) attributes {dimension_semantics = [#tpu.dimension_semantics<parallel>, #tpu.dimension_semantics<arbitrary>], iteration_bounds = array<i64: 2, 2>, scalar_prefetch = 0 : i64, scratch_operands = 2 : i64, tpu.core_type = #tpu.core_type<tc>, window_params = [{transform_indices = @transform_0, window_bounds = array<i64: 1, 4, 16, 8>}, {transform_indices = @transform_1, window_bounds = array<i64: 1, 4, 32, 8>}, {transform_indices = @transform_2, window_bounds = array<i64: 1, 4, 32, 8>}, {transform_indices = @transform_3, window_bounds = array<i64: 1, 1, 16, 32>}, {pipeline_mode = #tpu.pipeline_mode<synchronous>, transform_indices = @transform_4, window_bounds = array<i64: 32, 8>}, {pipeline_mode = #tpu.pipeline_mode<synchronous>, transform_indices = @transform_5, window_bounds = array<i64: 32, 8>}, {pipeline_mode = #tpu.pipeline_mode<synchronous>, transform_indices = @transform_6, window_bounds = array<i64: 8, 8>}, {pipeline_mode = #tpu.pipeline_mode<synchronous>, transform_indices = @transform_7, window_bounds = array<i64: 8, 8>}, {pipeline_mode = #tpu.pipeline_mode<synchronous>, transform_indices = @transform_8, window_bounds = array<i64: 8, 8>}, {pipeline_mode = #tpu.pipeline_mode<synchronous>, transform_indices = @transform_9, window_bounds = array<i64: 8, 8>}, {pipeline_mode = #tpu.pipeline_mode<synchronous>, transform_indices = @transform_10, window_bounds = array<i64: 8, 8>}, {pipeline_mode = #tpu.pipeline_mode<synchronous>, transform_indices = @transform_11, window_bounds = array<i64: 4, 8, 32>}, {pipeline_mode = #tpu.pipeline_mode<synchronous>, transform_indices = @transform_12, window_bounds = array<i64: 1, 32>}, {transform_indices = @transform_13, window_bounds = array<i64: 1, 16, 32>}]} {
    %c0_i32 = arith.constant 0 : i32
    %0 = arith.cmpi eq, %arg1, %c0_i32 : i32
    %1 = arith.extui %0 : i1 to i32
    %c0_i32_0 = arith.constant 0 : i32
    %2 = arith.cmpi ne, %1, %c0_i32_0 : i32
    scf.if %2 {
      %c0_45 = arith.constant 0 : index
      %c0_46 = arith.constant 0 : index
      %87 = vector.load %arg6[%c0_45, %c0_46] : memref<32x8xf32, #tpu.memory_space<vmem>>, vector<32x8xf32>
      %c0_47 = arith.constant 0 : index
      %c0_48 = arith.constant 0 : index
      %88 = vector.load %arg7[%c0_47, %c0_48] : memref<32x8xf32, #tpu.memory_space<vmem>>, vector<32x8xf32>
      %c0_49 = arith.constant 0 : index
      %c0_50 = arith.constant 0 : index
      %c0_51 = arith.constant 0 : index
      %c0_52 = arith.constant 0 : index
      %89 = vector.load %arg3[%c0_49, %c0_50, %c0_51, %c0_52] : memref<1x4x32x8xbf16, #tpu.memory_space<vmem>>, vector<1x4x32x8xbf16>
      %90 = vector.shape_cast %89 : vector<1x4x32x8xbf16> to vector<4x32x8xbf16>
      %91 = arith.extf %90 : vector<4x32x8xbf16> to vector<4x32x8xf32>
      %92 = vector.shape_cast %87 : vector<32x8xf32> to vector<1x32x8xf32>
      %93 = vector.broadcast %92 : vector<1x32x8xf32> to vector<4x32x8xf32>
      %94 = arith.mulf %91, %93 : vector<4x32x8xf32>
      %95 = vector.shape_cast %94 : vector<4x32x8xf32> to vector<128x8xf32>
      %96 = arith.truncf %95 : vector<128x8xf32> to vector<128x8xbf16>
      %97 = vector.shape_cast %88 : vector<32x8xf32> to vector<1x32x8xf32>
      %98 = vector.broadcast %97 : vector<1x32x8xf32> to vector<4x32x8xf32>
      %99 = arith.mulf %91, %98 : vector<4x32x8xf32>
      %100 = vector.shape_cast %99 : vector<4x32x8xf32> to vector<128x8xf32>
      %101 = arith.truncf %100 : vector<128x8xf32> to vector<128x8xbf16>
      %c0_53 = arith.constant 0 : index
      %c0_54 = arith.constant 0 : index
      %102 = vector.load %arg10[%c0_53, %c0_54] : memref<8x8xbf16, #tpu.memory_space<vmem>>, vector<8x8xbf16>
      %cst_55 = arith.constant dense<0.000000e+00> : vector<128x8xf32>
      %103 = tpu.matmul %96, %102, %cst_55 {dimension_numbers = #tpu.dot_dimension_numbers<[1], [0], [0], [1], [0, 0, 1, 1], [], []>} : vector<128x8xbf16>, vector<8x8xbf16>, vector<128x8xf32> -> vector<128x8xf32>
      %c0_56 = arith.constant 0 : index
      %c0_57 = arith.constant 0 : index
      %104 = vector.load %arg11[%c0_56, %c0_57] : memref<8x8xbf16, #tpu.memory_space<vmem>>, vector<8x8xbf16>
      %cst_58 = arith.constant dense<0.000000e+00> : vector<128x8xf32>
      %105 = tpu.matmul %101, %104, %cst_58 {dimension_numbers = #tpu.dot_dimension_numbers<[1], [0], [0], [1], [0, 0, 1, 1], [], []>} : vector<128x8xbf16>, vector<8x8xbf16>, vector<128x8xf32> -> vector<128x8xf32>
      %106 = arith.addf %103, %105 : vector<128x8xf32>
      %c0_59 = arith.constant 0 : index
      %c0_60 = arith.constant 0 : index
      %c0_61 = arith.constant 0 : index
      %c0_62 = arith.constant 0 : index
      %107 = vector.load %arg4[%c0_59, %c0_60, %c0_61, %c0_62] : memref<1x4x32x8xbf16, #tpu.memory_space<vmem>>, vector<1x4x32x8xbf16>
      %108 = vector.shape_cast %107 : vector<1x4x32x8xbf16> to vector<4x32x8xbf16>
      %109 = vector.shape_cast %108 : vector<4x32x8xbf16> to vector<128x8xbf16>
      %c0_63 = arith.constant 0 : index
      %c0_64 = arith.constant 0 : index
      %110 = vector.load %arg12[%c0_63, %c0_64] : memref<8x8xbf16, #tpu.memory_space<vmem>>, vector<8x8xbf16>
      %cst_65 = arith.constant dense<0.000000e+00> : vector<128x8xf32>
      %111 = tpu.matmul %109, %110, %cst_65 {dimension_numbers = #tpu.dot_dimension_numbers<[1], [0], [0], [1], [0, 0, 1, 1], [], []>} : vector<128x8xbf16>, vector<8x8xbf16>, vector<128x8xf32> -> vector<128x8xf32>
      %112 = vector.shape_cast %106 : vector<128x8xf32> to vector<4x32x8xf32>
      %113 = arith.truncf %112 : vector<4x32x8xf32> to vector<4x32x8xbf16>
      %c0_66 = arith.constant 0 : index
      %c0_67 = arith.constant 0 : index
      %c0_68 = arith.constant 0 : index
      %114 = vector.load %arg16[%c0_66, %c0_67, %c0_68] : memref<4x32x8xbf16, #tpu.memory_space<vmem>>, vector<4x32x8xbf16>
      tpu.vector_store %arg16[%c0_66, %c0_67, %c0_68], %113 {strides = array<i32>} : memref<4x32x8xbf16, #tpu.memory_space<vmem>>, vector<4x32x8xbf16>,
      %115 = vector.shape_cast %111 : vector<128x8xf32> to vector<4x32x8xf32>
      %116 = arith.truncf %115 : vector<4x32x8xf32> to vector<4x32x8xbf16>
      %c0_69 = arith.constant 0 : index
      %c0_70 = arith.constant 0 : index
      %c0_71 = arith.constant 0 : index
      %117 = vector.load %arg17[%c0_69, %c0_70, %c0_71] : memref<4x32x8xbf16, #tpu.memory_space<vmem>>, vector<4x32x8xbf16>
      tpu.vector_store %arg17[%c0_69, %c0_70, %c0_71], %116 {strides = array<i32>} : memref<4x32x8xbf16, #tpu.memory_space<vmem>>, vector<4x32x8xbf16>,
    } else {
    }
    %c16_i32 = arith.constant 16 : i32
    %3 = arith.muli %arg1, %c16_i32 : i32
    %4 = tpu.assume_multiple %3, 16 : i32
    %5 = arith.index_cast %4 : i32 to index
    %c0 = arith.constant 0 : index
    %6 = vector.load %arg6[%5, %c0] : memref<32x8xf32, #tpu.memory_space<vmem>>, vector<16x8xf32>
    %7 = arith.index_cast %4 : i32 to index
    %c0_1 = arith.constant 0 : index
    %8 = vector.load %arg7[%7, %c0_1] : memref<32x8xf32, #tpu.memory_space<vmem>>, vector<16x8xf32>
    %c0_2 = arith.constant 0 : index
    %c0_3 = arith.constant 0 : index
    %c0_4 = arith.constant 0 : index
    %c0_5 = arith.constant 0 : index
    %9 = vector.load %arg2[%c0_2, %c0_3, %c0_4, %c0_5] : memref<1x4x16x8xbf16, #tpu.memory_space<vmem>>, vector<1x4x16x8xbf16>
    %10 = vector.shape_cast %9 : vector<1x4x16x8xbf16> to vector<4x16x8xbf16>
    %11 = arith.extf %10 : vector<4x16x8xbf16> to vector<4x16x8xf32>
    %12 = vector.shape_cast %6 : vector<16x8xf32> to vector<1x16x8xf32>
    %13 = vector.broadcast %12 : vector<1x16x8xf32> to vector<4x16x8xf32>
    %14 = arith.mulf %11, %13 : vector<4x16x8xf32>
    %15 = vector.shape_cast %14 : vector<4x16x8xf32> to vector<64x8xf32>
    %16 = arith.truncf %15 : vector<64x8xf32> to vector<64x8xbf16>
    %17 = vector.shape_cast %8 : vector<16x8xf32> to vector<1x16x8xf32>
    %18 = vector.broadcast %17 : vector<1x16x8xf32> to vector<4x16x8xf32>
    %19 = arith.mulf %11, %18 : vector<4x16x8xf32>
    %20 = vector.shape_cast %19 : vector<4x16x8xf32> to vector<64x8xf32>
    %21 = arith.truncf %20 : vector<64x8xf32> to vector<64x8xbf16>
    %c0_6 = arith.constant 0 : index
    %c0_7 = arith.constant 0 : index
    %22 = vector.load %arg8[%c0_6, %c0_7] : memref<8x8xbf16, #tpu.memory_space<vmem>>, vector<8x8xbf16>
    %cst = arith.constant dense<0.000000e+00> : vector<64x8xf32>
    %23 = tpu.matmul %16, %22, %cst {dimension_numbers = #tpu.dot_dimension_numbers<[1], [0], [0], [1], [0, 0, 1, 1], [], []>} : vector<64x8xbf16>, vector<8x8xbf16>, vector<64x8xf32> -> vector<64x8xf32>
    %c0_8 = arith.constant 0 : index
    %c0_9 = arith.constant 0 : index
    %24 = vector.load %arg9[%c0_8, %c0_9] : memref<8x8xbf16, #tpu.memory_space<vmem>>, vector<8x8xbf16>
    %cst_10 = arith.constant dense<0.000000e+00> : vector<64x8xf32>
    %25 = tpu.matmul %21, %24, %cst_10 {dimension_numbers = #tpu.dot_dimension_numbers<[1], [0], [0], [1], [0, 0, 1, 1], [], []>} : vector<64x8xbf16>, vector<8x8xbf16>, vector<64x8xf32> -> vector<64x8xf32>
    %26 = arith.addf %23, %25 : vector<64x8xf32>
    %27 = vector.shape_cast %26 : vector<64x8xf32> to vector<4x16x8xf32>
    %28 = arith.truncf %27 : vector<4x16x8xf32> to vector<4x16x8xbf16>
    %c0_11 = arith.constant 0 : index
    %c0_12 = arith.constant 0 : index
    %c0_13 = arith.constant 0 : index
    %29 = vector.load %arg16[%c0_11, %c0_12, %c0_13] : memref<4x32x8xbf16, #tpu.memory_space<vmem>>, vector<4x32x8xbf16>
    %c0_14 = arith.constant 0 : index
    %c0_15 = arith.constant 0 : index
    %c0_16 = arith.constant 0 : index
    %30 = vector.load %arg17[%c0_14, %c0_15, %c0_16] : memref<4x32x8xbf16, #tpu.memory_space<vmem>>, vector<4x32x8xbf16>
    "tpu.trace_start"() <{level = 10 : i32, message = "hqd,hkd->hqk"}> : () -> ()
    %cst_17 = arith.constant dense<0.000000e+00> : vector<4x16x32xf32>
    %31 = tpu.matmul %28, %29, %cst_17 {dimension_numbers = #tpu.dot_dimension_numbers<[2], [2], [1], [1], [0, 0, 0, 1, 1, 1], [0], [0]>} : vector<4x16x8xbf16>, vector<4x32x8xbf16>, vector<4x16x32xf32> -> vector<4x16x32xf32>
    "tpu.trace_stop"() : () -> ()
    %c0_18 = arith.constant 0 : index
    %c0_19 = arith.constant 0 : index
    %c0_20 = arith.constant 0 : index
    %c0_21 = arith.constant 0 : index
    %32 = vector.load %arg5[%c0_18, %c0_19, %c0_20, %c0_21] : memref<1x1x16x32xbf16, #tpu.memory_space<vmem>>, vector<1x1x16x32xbf16>
    %33 = vector.shape_cast %32 : vector<1x1x16x32xbf16> to vector<16x32xbf16>
    %34 = arith.extf %33 : vector<16x32xbf16> to vector<16x32xf32>
    %35 = vector.shape_cast %34 : vector<16x32xf32> to vector<1x16x32xf32>
    %36 = vector.broadcast %35 : vector<1x16x32xf32> to vector<4x16x32xf32>
    %37 = arith.addf %31, %36 : vector<4x16x32xf32>
    %cst_22 = arith.constant 0.176776692 : f32
    %38 = vector.broadcast %cst_22 : f32 to vector<4x16x32xf32>
    %39 = arith.mulf %37, %38 : vector<4x16x32xf32>
    %cst_23 = arith.constant dense<0xFF800000> : vector<4x16xf32>
    %40 = vector.multi_reduction <maximumf>, %39, %cst_23 [2] : vector<4x16x32xf32> to vector<4x16xf32>
    %41 = vector.shape_cast %40 : vector<4x16xf32> to vector<4x16x1xf32>
    %42 = vector.broadcast %41 : vector<4x16x1xf32> to vector<4x16x32xf32>
    %43 = arith.subf %39, %42 : vector<4x16x32xf32>
    %44 = math.exp %43 : vector<4x16x32xf32>
    %cst_24 = arith.constant dense<0.000000e+00> : vector<4x16xf32>
    %45 = vector.multi_reduction <add>, %44, %cst_24 [2] : vector<4x16x32xf32> to vector<4x16xf32>
    %46 = vector.shape_cast %45 : vector<4x16xf32> to vector<4x16x1xf32>
    %47 = tpu.reciprocal %46 {approx = true} : vector<4x16x1xf32> -> vector<4x16x1xf32>
    %48 = vector.broadcast %47 : vector<4x16x1xf32> to vector<4x16x32xf32>
    %49 = arith.mulf %44, %48 : vector<4x16x32xf32>
    %50 = arith.truncf %49 : vector<4x16x32xf32> to vector<4x16x32xbf16>
    "tpu.trace_start"() <{level = 10 : i32, message = "hqk,hkd->hqd"}> : () -> ()
    %cst_25 = arith.constant dense<0.000000e+00> : vector<4x16x8xf32>
    %51 = tpu.matmul %50, %30, %cst_25 {dimension_numbers = #tpu.dot_dimension_numbers<[2], [1], [1], [2], [0, 0, 0, 1, 1, 2], [0], [0]>} : vector<4x16x32xbf16>, vector<4x32x8xbf16>, vector<4x16x8xf32> -> vector<4x16x8xf32>
    %cst_26 = arith.constant 0.000000e+00 : f32
    "tpu.trace_stop"() : () -> ()
    %52 = vector.broadcast %cst_26 : f32 to vector<16x32xf32>
    %53 = vector.extract_strided_slice %51 {offsets = [0, 0, 0], sizes = [1, 16, 8], strides = [1, 1, 1]} : vector<4x16x8xf32> to vector<1x16x8xf32>
    %54 = vector.shape_cast %53 : vector<1x16x8xf32> to vector<16x8xf32>
    %55 = arith.truncf %54 : vector<16x8xf32> to vector<16x8xbf16>
    %c0_27 = arith.constant 0 : index
    %c0_28 = arith.constant 0 : index
    %c0_29 = arith.constant 0 : index
    %56 = vector.load %arg13[%c0_27, %c0_28, %c0_29] : memref<4x8x32xbf16, #tpu.memory_space<vmem>>, vector<1x8x32xbf16>
    %57 = vector.shape_cast %56 : vector<1x8x32xbf16> to vector<8x32xbf16>
    %cst_30 = arith.constant dense<0.000000e+00> : vector<16x32xf32>
    %58 = tpu.matmul %55, %57, %cst_30 {dimension_numbers = #tpu.dot_dimension_numbers<[1], [0], [0], [1], [0, 0, 1, 1], [], []>} : vector<16x8xbf16>, vector<8x32xbf16>, vector<16x32xf32> -> vector<16x32xf32>
    %59 = arith.addf %52, %58 : vector<16x32xf32>
    %60 = vector.extract_strided_slice %51 {offsets = [1, 0, 0], sizes = [1, 16, 8], strides = [1, 1, 1]} : vector<4x16x8xf32> to vector<1x16x8xf32>
    %61 = vector.shape_cast %60 : vector<1x16x8xf32> to vector<16x8xf32>
    %62 = arith.truncf %61 : vector<16x8xf32> to vector<16x8xbf16>
    %c1 = arith.constant 1 : index
    %c0_31 = arith.constant 0 : index
    %c0_32 = arith.constant 0 : index
    %63 = vector.load %arg13[%c1, %c0_31, %c0_32] : memref<4x8x32xbf16, #tpu.memory_space<vmem>>, vector<1x8x32xbf16>
    %64 = vector.shape_cast %63 : vector<1x8x32xbf16> to vector<8x32xbf16>
    %cst_33 = arith.constant dense<0.000000e+00> : vector<16x32xf32>
    %65 = tpu.matmul %62, %64, %cst_33 {dimension_numbers = #tpu.dot_dimension_numbers<[1], [0], [0], [1], [0, 0, 1, 1], [], []>} : vector<16x8xbf16>, vector<8x32xbf16>, vector<16x32xf32> -> vector<16x32xf32>
    %66 = arith.addf %59, %65 : vector<16x32xf32>
    %67 = vector.extract_strided_slice %51 {offsets = [2, 0, 0], sizes = [1, 16, 8], strides = [1, 1, 1]} : vector<4x16x8xf32> to vector<1x16x8xf32>
    %68 = vector.shape_cast %67 : vector<1x16x8xf32> to vector<16x8xf32>
    %69 = arith.truncf %68 : vector<16x8xf32> to vector<16x8xbf16>
    %c2 = arith.constant 2 : index
    %c0_34 = arith.constant 0 : index
    %c0_35 = arith.constant 0 : index
    %70 = vector.load %arg13[%c2, %c0_34, %c0_35] : memref<4x8x32xbf16, #tpu.memory_space<vmem>>, vector<1x8x32xbf16>
    %71 = vector.shape_cast %70 : vector<1x8x32xbf16> to vector<8x32xbf16>
    %cst_36 = arith.constant dense<0.000000e+00> : vector<16x32xf32>
    %72 = tpu.matmul %69, %71, %cst_36 {dimension_numbers = #tpu.dot_dimension_numbers<[1], [0], [0], [1], [0, 0, 1, 1], [], []>} : vector<16x8xbf16>, vector<8x32xbf16>, vector<16x32xf32> -> vector<16x32xf32>
    %73 = arith.addf %66, %72 : vector<16x32xf32>
    %74 = vector.extract_strided_slice %51 {offsets = [3, 0, 0], sizes = [1, 16, 8], strides = [1, 1, 1]} : vector<4x16x8xf32> to vector<1x16x8xf32>
    %75 = vector.shape_cast %74 : vector<1x16x8xf32> to vector<16x8xf32>
    %76 = arith.truncf %75 : vector<16x8xf32> to vector<16x8xbf16>
    %c3 = arith.constant 3 : index
    %c0_37 = arith.constant 0 : index
    %c0_38 = arith.constant 0 : index
    %77 = vector.load %arg13[%c3, %c0_37, %c0_38] : memref<4x8x32xbf16, #tpu.memory_space<vmem>>, vector<1x8x32xbf16>
    %78 = vector.shape_cast %77 : vector<1x8x32xbf16> to vector<8x32xbf16>
    %cst_39 = arith.constant dense<0.000000e+00> : vector<16x32xf32>
    %79 = tpu.matmul %76, %78, %cst_39 {dimension_numbers = #tpu.dot_dimension_numbers<[1], [0], [0], [1], [0, 0, 1, 1], [], []>} : vector<16x8xbf16>, vector<8x32xbf16>, vector<16x32xf32> -> vector<16x32xf32>
    %80 = arith.addf %73, %79 : vector<16x32xf32>
    %c0_40 = arith.constant 0 : index
    %c0_41 = arith.constant 0 : index
    %81 = vector.load %arg14[%c0_40, %c0_41] : memref<1x32xf32, #tpu.memory_space<vmem>>, vector<1x32xf32>
    %82 = vector.broadcast %81 : vector<1x32xf32> to vector<16x32xf32>
    %83 = arith.addf %80, %82 : vector<16x32xf32>
    %c0_42 = arith.constant 0 : index
    %c0_43 = arith.constant 0 : index
    %c0_44 = arith.constant 0 : index
    %84 = vector.load %arg15[%c0_42, %c0_43, %c0_44] : memref<1x16x32xf32, #tpu.memory_space<vmem>>, vector<1x16x32xf32>
    %85 = vector.shape_cast %84 : vector<1x16x32xf32> to vector<16x32xf32>
    %86 = vector.shape_cast %83 : vector<16x32xf32> to vector<1x16x32xf32>
    tpu.vector_store %arg15[%c0_42, %c0_43, %c0_44], %86 {strides = array<i32>} : memref<1x16x32xf32, #tpu.memory_space<vmem>>, vector<1x16x32xf32>,
    return
  }
  func.func @transform_0(%arg0: i32, %arg1: i32) -> (i32, i32, i32, i32) {
    %c0_i32 = arith.constant 0 : i32
    %c0_i32_0 = arith.constant 0 : i32
    %c0_i32_1 = arith.constant 0 : i32
    return %arg0, %c0_i32, %arg1, %c0_i32_0 : i32, i32, i32, i32
  }
  func.func @transform_1(%arg0: i32, %arg1: i32) -> (i32, i32, i32, i32) {
    %c0_i32 = arith.constant 0 : i32
    %c0_i32_0 = arith.constant 0 : i32
    %c0_i32_1 = arith.constant 0 : i32
    %c0_i32_2 = arith.constant 0 : i32
    return %arg0, %c0_i32, %c0_i32_0, %c0_i32_1 : i32, i32, i32, i32
  }
  func.func @transform_2(%arg0: i32, %arg1: i32) -> (i32, i32, i32, i32) {
    %c0_i32 = arith.constant 0 : i32
    %c0_i32_0 = arith.constant 0 : i32
    %c0_i32_1 = arith.constant 0 : i32
    %c0_i32_2 = arith.constant 0 : i32
    return %arg0, %c0_i32, %c0_i32_0, %c0_i32_1 : i32, i32, i32, i32
  }
  func.func @transform_3(%arg0: i32, %arg1: i32) -> (i32, i32, i32, i32) {
    %c0_i32 = arith.constant 0 : i32
    %c0_i32_0 = arith.constant 0 : i32
    %c0_i32_1 = arith.constant 0 : i32
    %c0_i32_2 = arith.constant 0 : i32
    return %c0_i32, %c0_i32_0, %arg1, %c0_i32_1 : i32, i32, i32, i32
  }
  func.func @transform_4(%arg0: i32, %arg1: i32) -> (i32, i32) {
    %c0_i32 = arith.constant 0 : i32
    %c0_i32_0 = arith.constant 0 : i32
    %c0_i32_1 = arith.constant 0 : i32
    return %c0_i32, %c0_i32_0 : i32, i32
  }
  func.func @transform_5(%arg0: i32, %arg1: i32) -> (i32, i32) {
    %c0_i32 = arith.constant 0 : i32
    %c0_i32_0 = arith.constant 0 : i32
    %c0_i32_1 = arith.constant 0 : i32
    return %c0_i32, %c0_i32_0 : i32, i32
  }
  func.func @transform_6(%arg0: i32, %arg1: i32) -> (i32, i32) {
    %c0_i32 = arith.constant 0 : i32
    %c0_i32_0 = arith.constant 0 : i32
    %c0_i32_1 = arith.constant 0 : i32
    return %c0_i32, %c0_i32_0 : i32, i32
  }
  func.func @transform_7(%arg0: i32, %arg1: i32) -> (i32, i32) {
    %c0_i32 = arith.constant 0 : i32
    %c0_i32_0 = arith.constant 0 : i32
    %c0_i32_1 = arith.constant 0 : i32
    return %c0_i32, %c0_i32_0 : i32, i32
  }
  func.func @transform_8(%arg0: i32, %arg1: i32) -> (i32, i32) {
    %c0_i32 = arith.constant 0 : i32
    %c0_i32_0 = arith.constant 0 : i32
    %c0_i32_1 = arith.constant 0 : i32
    return %c0_i32, %c0_i32_0 : i32, i32
  }
  func.func @transform_9(%arg0: i32, %arg1: i32) -> (i32, i32) {
    %c0_i32 = arith.constant 0 : i32
    %c0_i32_0 = arith.constant 0 : i32
    %c0_i32_1 = arith.constant 0 : i32
    return %c0_i32, %c0_i32_0 : i32, i32
  }
  func.func @transform_10(%arg0: i32, %arg1: i32) -> (i32, i32) {
    %c0_i32 = arith.constant 0 : i32
    %c0_i32_0 = arith.constant 0 : i32
    %c0_i32_1 = arith.constant 0 : i32
    return %c0_i32, %c0_i32_0 : i32, i32
  }
  func.func @transform_11(%arg0: i32, %arg1: i32) -> (i32, i32, i32) {
    %c0_i32 = arith.constant 0 : i32
    %c0_i32_0 = arith.constant 0 : i32
    %c0_i32_1 = arith.constant 0 : i32
    %c0_i32_2 = arith.constant 0 : i32
    return %c0_i32, %c0_i32_0, %c0_i32_1 : i32, i32, i32
  }
  func.func @transform_12(%arg0: i32, %arg1: i32) -> (i32, i32) {
    %c0_i32 = arith.constant 0 : i32
    %c0_i32_0 = arith.constant 0 : i32
    %c0_i32_1 = arith.constant 0 : i32
    return %c0_i32, %c0_i32_0 : i32, i32
  }
  func.func @transform_13(%arg0: i32, %arg1: i32) -> (i32, i32, i32) {
    %c0_i32 = arith.constant 0 : i32
    %c0_i32_0 = arith.constant 0 : i32
    return %arg0, %arg1, %c0_i32 : i32, i32, i32
  }
}

</mosaic_0001>

<llo_original>
// kernel: tpu_custom_call.1
$region0: #{tpu_custom_call.1}
  #allocation0 [shape = 'u32[]', space=smem, size = 0x4, offset = 0x4, fixed_abs, tag = 'smem constant byte address 0x4 - core index']
  #allocation1 [shape = 'u32[144,128]{1,0:T(1,128)}', space=vmem, size = 0x12000, scoped, tag = 'internal scratch']
  #allocation2 [shape = 'bf16[4,32,8]{2,1,0:T(16,128)(2,1)}', space=vmem, size = 0x8000, scoped, tag = 'scratch operand']
  #allocation3 [shape = 'bf16[4,32,8]{2,1,0:T(16,128)(2,1)}', space=vmem, size = 0x8000, scoped, tag = 'scratch operand']
  #allocation26 [shape = 's32[]', space=sflag, size = 0x4, offset = 0, fixed_abs, tag = 'sflag constant byte address 0x0 - dummy sync flag']
  %s0 = inlined_call_operand.hbm [shape: bf16[2,4,32,8], index: 0, kind: input, shape index: {}]
  %s1 = inlined_call_operand.hbm [shape: bf16[2,4,32,8], index: 1, kind: input, shape index: {}]
  %s2 = inlined_call_operand.hbm [shape: bf16[2,4,32,8], index: 2, kind: input, shape index: {}]
  %s3 = inlined_call_operand.hbm [shape: bf16[1,1,32,32], index: 3, kind: input, shape index: {}]
  %s4 = inlined_call_operand.hbm [shape: f32[32,8], index: 4, kind: input, shape index: {}]
  %s5 = inlined_call_operand.hbm [shape: f32[32,8], index: 5, kind: input, shape index: {}]
  %s6 = inlined_call_operand.hbm [shape: bf16[8,8], index: 6, kind: input, shape index: {}]
  %s7 = inlined_call_operand.hbm [shape: bf16[8,8], index: 7, kind: input, shape index: {}]
  %s8 = inlined_call_operand.hbm [shape: bf16[8,8], index: 8, kind: input, shape index: {}]
  %s9 = inlined_call_operand.hbm [shape: bf16[8,8], index: 9, kind: input, shape index: {}]
  %s10 = inlined_call_operand.hbm [shape: bf16[8,8], index: 10, kind: input, shape index: {}]
  %s11 = inlined_call_operand.hbm [shape: bf16[4,8,32], index: 11, kind: input, shape index: {}]
  %s12 = inlined_call_operand.hbm [shape: f32[1,32], index: 12, kind: input, shape index: {}]
  %s13 = inlined_call_operand.hbm [shape: f32[2,32,32], index: 13, kind: output, shape index: {}]
  %s14 = sld [smem:[#allocation0]]
  $region141: #{tpu_custom_call.1} parent=0
    _
  %s16 = ssub.s32 1, %s14
  %s17 = scalar_select 0, %s16, %s14
  $region1: #{tpu_custom_call.1} parent=0
    #allocation4 [shape = 'u8[32768]{0}', space=vmem, size = 0x8000, scoped, tag = 'input window, operand 0']
    #allocation5 [shape = 's32[2]{0}', space=sflag, size = 0x8, scoped, tag = 'scoped memory for tpu_custom_call.1']
    #allocation6 [shape = 's32[2]{0}', space=sflag, size = 0x8, scoped, tag = 'scoped memory for tpu_custom_call.1']
    #allocation7 [shape = 'u8[65536]{0}', space=vmem, size = 0x10000, scoped, tag = 'input window, operand 1']
    #allocation8 [shape = 's32[2]{0}', space=sflag, size = 0x8, scoped, tag = 'scoped memory for tpu_custom_call.1']
    #allocation9 [shape = 'u8[65536]{0}', space=vmem, size = 0x10000, scoped, tag = 'input window, operand 2']
    #allocation10 [shape = 'u8[8192]{0}', space=vmem, size = 0x2000, scoped, tag = 'input window, operand 3']
    #allocation11 [shape = 's32[2]{0}', space=sflag, size = 0x8, scoped, tag = 'scoped memory for tpu_custom_call.1']
    #allocation12 [shape = 'u8[16384]{0}', space=vmem, size = 0x4000, scoped, tag = 'input window, operand 4, single buffered']
    #allocation13 [shape = 'u8[16384]{0}', space=vmem, size = 0x4000, scoped, tag = 'input window, operand 5, single buffered']
    #allocation14 [shape = 's32[1]{0}', space=sflag, size = 0x4, scoped, tag = 'scoped memory for tpu_custom_call.1']
    #allocation15 [shape = 'u8[2048]{0}', space=vmem, size = 0x800, scoped, tag = 'input window, operand 6, single buffered']
    #allocation16 [shape = 'u8[2048]{0}', space=vmem, size = 0x800, scoped, tag = 'input window, operand 7, single buffered']
    #allocation17 [shape = 's32[1]{0}', space=sflag, size = 0x4, scoped, tag = 'scoped memory for tpu_custom_call.1']
    #allocation18 [shape = 'u8[2048]{0}', space=vmem, size = 0x800, scoped, tag = 'input window, operand 8, single buffered']
    #allocation19 [shape = 'u8[2048]{0}', space=vmem, size = 0x800, scoped, tag = 'input window, operand 9, single buffered']
    #allocation20 [shape = 's32[1]{0}', space=sflag, size = 0x4, scoped, tag = 'scoped memory for tpu_custom_call.1']
    #allocation21 [shape = 'u8[2048]{0}', space=vmem, size = 0x800, scoped, tag = 'input window, operand 10, single buffered']
    #allocation22 [shape = 'u8[8192]{0}', space=vmem, size = 0x2000, scoped, tag = 'input window, operand 11, single buffered']
    #allocation23 [shape = 's32[1]{0}', space=sflag, size = 0x4, scoped, tag = 'scoped memory for tpu_custom_call.1']
    #allocation24 [shape = 'u8[512]{0}', space=vmem, size = 0x400, scoped, tag = 'input window, operand 12, single buffered']
    #allocation25 [shape = 'u8[16384]{0}', space=vmem, size = 0x4000, scoped, tag = 'output window, operand 0']
    %18 = vsyncpa [#allocation5], 0
    %s19 = scalar_lea.sflag [#allocation5], 1
    %20 = vsyncpa %s19, 0
    %21 = vsyncpa [#allocation8], 0
    %s22 = scalar_lea.sflag [#allocation8], 1
    %23 = vsyncpa %s22, 0
    %24 = vsyncpa [#allocation11], 0
    %s25 = scalar_lea.sflag [#allocation11], 1
    %26 = vsyncpa %s25, 0
    %27 = vsyncpa [#allocation14], 0
    %28 = vsyncpa [#allocation17], 0
    %29 = vsyncpa [#allocation20], 0
    %30 = vsyncpa [#allocation23], 0
    %31 = vsyncpa [#allocation6], 0
    %s32 = scalar_lea.sflag [#allocation6], 1
    %33 = vsyncpa %s32, 0
    loop: start=0, step=1, limit=6
    $region2: #{tpu_custom_call.1} parent=1 // loop_pre_header
      _
    $region3: #{tpu_custom_call.1} parent=1 // loop_header
      %s35 = sphi 0, %s39
      %p36 = scmp.ge.s32.totalorder %s35, 6
      %s42 = sphi 0, %s54
      %s43 = sphi 0, %s50
      %s44 = sphi 0, %s42
      %s45 = sphi 0, %s43
      %s46 = sphi 0, %s44
      %s47 = sphi 0, %s45
      %s59 = sphi 0, %s61
      %s62 = sphi 0, %s59
      %s63 = sphi 0, %s62
      %s79 = sphi 0, %s63
      %s85 = sphi 0, %s87
      %s88 = sphi 0, %s85
      %s89 = sphi 0, %s88
      %s105 = sphi 0, %s89
      %s111 = sphi 0, %s113
      %s114 = sphi 0, %s111
      %s115 = sphi 0, %s114
      %s131 = sphi 0, %s115
      %s137 = sphi 0, %s139
      %s140 = sphi 0, %s137
      %s141 = sphi 0, %s140
      %s157 = sphi 0, %s141
      %s161 = sphi 0, %s161
      %s163 = sphi 0, %s161
      %s164 = sphi 0, %s163
      %s178 = sphi 0, %s164
      %s182 = sphi 0, %s182
      %s184 = sphi 0, %s182
      %s185 = sphi 0, %s184
      %s199 = sphi 0, %s185
      %s203 = sphi 0, %s203
      %s205 = sphi 0, %s203
      %s206 = sphi 0, %s205
      %s220 = sphi 0, %s206
      %s224 = sphi 0, %s224
      %s226 = sphi 0, %s224
      %s227 = sphi 0, %s226
      %s241 = sphi 0, %s227
      %s245 = sphi 0, %s245
      %s247 = sphi 0, %s245
      %s248 = sphi 0, %s247
      %s262 = sphi 0, %s248
      %s266 = sphi 0, %s266
      %s268 = sphi 0, %s266
      %s269 = sphi 0, %s268
      %s283 = sphi 0, %s269
      %s287 = sphi 0, %s287
      %s289 = sphi 0, %s287
      %s290 = sphi 0, %s289
      %s304 = sphi 0, %s290
      %s308 = sphi 0, %s308
      %s310 = sphi 0, %s308
      %s311 = sphi 0, %s310
      %s325 = sphi 0, %s311
      %s329 = sphi 0, %s329
      %s331 = sphi 0, %s329
      %s332 = sphi 0, %s331
      %s346 = sphi 0, %s332
      %s354 = sphi 0, %s356
      %s357 = sphi 0, %s354
      %s358 = sphi 0, %s357
      %s374 = sphi 0, %s358
    $region4: #{tpu_custom_call.1} parent=1 // loop_header_branch
      %38 = sbr.rel (%p36) target = $region8
    $region5: #{tpu_custom_call.1} parent=1 // loop_body
      %s40 = ssub.s32 %s35, 1
      %s41 = ssub.s32 %s35, 2
      %s48 = sadd.s32 1, %s43
      %p49 = scmp.ge.s32.totalorder %s48, 2
      %s50 = scalar_select %p49, 0, %s48
      %s51 = sadd.s32 1, %s42
      %s52 = scalar_select %p49, %s51, %s42
      %p53 = scmp.ge.s32.totalorder %s52, 2
      %s54 = scalar_select %p53, 0, %s52
      %s55 = ssub.s32 %s42, %s54
      %s56 = ssub.s32 %s43, %s50
      %s57 = sor.u32 %s55, %s56
      %p58 = scmp.eq.s32.totalorder %s57, 0
      %s60 = sadd.s32 %s59, 1
      %s61 = scalar_select %p58, %s59, %s60
      %p64 = pneg %p58
      %p65 = scmp.eq.s32.totalorder %s35, 3
      %p66 = por %p64, %p65
      %p67 = scmp.ne.s32.totalorder %s59, %s62
      %p68 = scmp.eq.s32.totalorder %s35, 0
      %p69 = por %p67, %p68
      %p70 = scmp.ne.s32.totalorder %s59, %s62
      %p71 = scmp.eq.s32.totalorder %s40, 3
      %p72 = por %p70, %p71
      %p73 = scmp.ne.s32.totalorder %s62, %s63
      %p74 = scmp.eq.s32.totalorder %s40, 0
      %p75 = por %p73, %p74
      %p76 = scmp.ne.s32.totalorder %s62, %s63
      %p77 = scmp.eq.s32.totalorder %s41, 3
      %p78 = por %p76, %p77
      %p80 = scmp.ne.s32.totalorder %s63, %s79
      %p81 = scmp.eq.s32.totalorder %s41, 0
      %p82 = por %p80, %p81
      %s83 = ssub.s32 %s42, %s54
      %p84 = scmp.eq.s32.totalorder %s83, 0
      %s86 = sadd.s32 %s85, 1
      %s87 = scalar_select %p84, %s85, %s86
      %p90 = pneg %p84
      %p91 = scmp.eq.s32.totalorder %s35, 3
      %p92 = por %p90, %p91
      %p93 = scmp.ne.s32.totalorder %s85, %s88
      %p94 = scmp.eq.s32.totalorder %s35, 0
      %p95 = por %p93, %p94
      %p96 = scmp.ne.s32.totalorder %s85, %s88
      %p97 = scmp.eq.s32.totalorder %s40, 3
      %p98 = por %p96, %p97
      %p99 = scmp.ne.s32.totalorder %s88, %s89
      %p100 = scmp.eq.s32.totalorder %s40, 0
      %p101 = por %p99, %p100
      %p102 = scmp.ne.s32.totalorder %s88, %s89
      %p103 = scmp.eq.s32.totalorder %s41, 3
      %p104 = por %p102, %p103
      %p106 = scmp.ne.s32.totalorder %s89, %s105
      %p107 = scmp.eq.s32.totalorder %s41, 0
      %p108 = por %p106, %p107
      %s109 = ssub.s32 %s42, %s54
      %p110 = scmp.eq.s32.totalorder %s109, 0
      %s112 = sadd.s32 %s111, 1
      %s113 = scalar_select %p110, %s111, %s112
      %p116 = pneg %p110
      %p117 = scmp.eq.s32.totalorder %s35, 3
      %p118 = por %p116, %p117
      %p119 = scmp.ne.s32.totalorder %s111, %s114
      %p120 = scmp.eq.s32.totalorder %s35, 0
      %p121 = por %p119, %p120
      %p122 = scmp.ne.s32.totalorder %s111, %s114
      %p123 = scmp.eq.s32.totalorder %s40, 3
      %p124 = por %p122, %p123
      %p125 = scmp.ne.s32.totalorder %s114, %s115
      %p126 = scmp.eq.s32.totalorder %s40, 0
      %p127 = por %p125, %p126
      %p128 = scmp.ne.s32.totalorder %s114, %s115
      %p129 = scmp.eq.s32.totalorder %s41, 3
      %p130 = por %p128, %p129
      %p132 = scmp.ne.s32.totalorder %s115, %s131
      %p133 = scmp.eq.s32.totalorder %s41, 0
      %p134 = por %p132, %p133
      %s135 = ssub.s32 %s43, %s50
      %p136 = scmp.eq.s32.totalorder %s135, 0
      %s138 = sadd.s32 %s137, 1
      %s139 = scalar_select %p136, %s137, %s138
      %p142 = pneg %p136
      %p143 = scmp.eq.s32.totalorder %s35, 3
      %p144 = por %p142, %p143
      %p145 = scmp.ne.s32.totalorder %s137, %s140
      %p146 = scmp.eq.s32.totalorder %s35, 0
      %p147 = por %p145, %p146
      %p148 = scmp.ne.s32.totalorder %s137, %s140
      %p149 = scmp.eq.s32.totalorder %s40, 3
      %p150 = por %p148, %p149
      %p151 = scmp.ne.s32.totalorder %s140, %s141
      %p152 = scmp.eq.s32.totalorder %s40, 0
      %p153 = por %p151, %p152
      %p154 = scmp.ne.s32.totalorder %s140, %s141
      %p155 = scmp.eq.s32.totalorder %s41, 3
      %p156 = por %p154, %p155
      %p158 = scmp.ne.s32.totalorder %s141, %s157
      %p159 = scmp.eq.s32.totalorder %s41, 0
      %p160 = por %p158, %p159
      %s162 = sadd.s32 %s161, 1
      %p165 = scmp.eq.s32.totalorder %s35, 3
      %p166 = scmp.ne.s32.totalorder %s161, %s163
      %p167 = scmp.eq.s32.totalorder %s35, 0
      %p168 = por %p166, %p167
      %p169 = scmp.ne.s32.totalorder %s161, %s163
      %p170 = scmp.eq.s32.totalorder %s40, 3
      %p171 = por %p169, %p170
      %p172 = scmp.ne.s32.totalorder %s163, %s164
      %p173 = scmp.eq.s32.totalorder %s40, 0
      %p174 = por %p172, %p173
      %p175 = scmp.ne.s32.totalorder %s163, %s164
      %p176 = scmp.eq.s32.totalorder %s41, 3
      %p177 = por %p175, %p176
      %p179 = scmp.ne.s32.totalorder %s164, %s178
      %p180 = scmp.eq.s32.totalorder %s41, 0
      %p181 = por %p179, %p180
      %s183 = sadd.s32 %s182, 1
      %p186 = scmp.eq.s32.totalorder %s35, 3
      %p187 = scmp.ne.s32.totalorder %s182, %s184
      %p188 = scmp.eq.s32.totalorder %s35, 0
      %p189 = por %p187, %p188
      %p190 = scmp.ne.s32.totalorder %s182, %s184
      %p191 = scmp.eq.s32.totalorder %s40, 3
      %p192 = por %p190, %p191
      %p193 = scmp.ne.s32.totalorder %s184, %s185
      %p194 = scmp.eq.s32.totalorder %s40, 0
      %p195 = por %p193, %p194
      %p196 = scmp.ne.s32.totalorder %s184, %s185
      %p197 = scmp.eq.s32.totalorder %s41, 3
      %p198 = por %p196, %p197
      %p200 = scmp.ne.s32.totalorder %s185, %s199
      %p201 = scmp.eq.s32.totalorder %s41, 0
      %p202 = por %p200, %p201
      %s204 = sadd.s32 %s203, 1
      %p207 = scmp.eq.s32.totalorder %s35, 3
      %p208 = scmp.ne.s32.totalorder %s203, %s205
      %p209 = scmp.eq.s32.totalorder %s35, 0
      %p210 = por %p208, %p209
      %p211 = scmp.ne.s32.totalorder %s203, %s205
      %p212 = scmp.eq.s32.totalorder %s40, 3
      %p213 = por %p211, %p212
      %p214 = scmp.ne.s32.totalorder %s205, %s206
      %p215 = scmp.eq.s32.totalorder %s40, 0
      %p216 = por %p214, %p215
      %p217 = scmp.ne.s32.totalorder %s205, %s206
      %p218 = scmp.eq.s32.totalorder %s41, 3
      %p219 = por %p217, %p218
      %p221 = scmp.ne.s32.totalorder %s206, %s220
      %p222 = scmp.eq.s32.totalorder %s41, 0
      %p223 = por %p221, %p222
      %s225 = sadd.s32 %s224, 1
      %p228 = scmp.eq.s32.totalorder %s35, 3
      %p229 = scmp.ne.s32.totalorder %s224, %s226
      %p230 = scmp.eq.s32.totalorder %s35, 0
      %p231 = por %p229, %p230
      %p232 = scmp.ne.s32.totalorder %s224, %s226
      %p233 = scmp.eq.s32.totalorder %s40, 3
      %p234 = por %p232, %p233
      %p235 = scmp.ne.s32.totalorder %s226, %s227
      %p236 = scmp.eq.s32.totalorder %s40, 0
      %p237 = por %p235, %p236
      %p238 = scmp.ne.s32.totalorder %s226, %s227
      %p239 = scmp.eq.s32.totalorder %s41, 3
      %p240 = por %p238, %p239
      %p242 = scmp.ne.s32.totalorder %s227, %s241
      %p243 = scmp.eq.s32.totalorder %s41, 0
      %p244 = por %p242, %p243
      %s246 = sadd.s32 %s245, 1
      %p249 = scmp.eq.s32.totalorder %s35, 3
      %p250 = scmp.ne.s32.totalorder %s245, %s247
      %p251 = scmp.eq.s32.totalorder %s35, 0
      %p252 = por %p250, %p251
      %p253 = scmp.ne.s32.totalorder %s245, %s247
      %p254 = scmp.eq.s32.totalorder %s40, 3
      %p255 = por %p253, %p254
      %p256 = scmp.ne.s32.totalorder %s247, %s248
      %p257 = scmp.eq.s32.totalorder %s40, 0
      %p258 = por %p256, %p257
      %p259 = scmp.ne.s32.totalorder %s247, %s248
      %p260 = scmp.eq.s32.totalorder %s41, 3
      %p261 = por %p259, %p260
      %p263 = scmp.ne.s32.totalorder %s248, %s262
      %p264 = scmp.eq.s32.totalorder %s41, 0
      %p265 = por %p263, %p264
      %s267 = sadd.s32 %s266, 1
      %p270 = scmp.eq.s32.totalorder %s35, 3
      %p271 = scmp.ne.s32.totalorder %s266, %s268
      %p272 = scmp.eq.s32.totalorder %s35, 0
      %p273 = por %p271, %p272
      %p274 = scmp.ne.s32.totalorder %s266, %s268
      %p275 = scmp.eq.s32.totalorder %s40, 3
      %p276 = por %p274, %p275
      %p277 = scmp.ne.s32.totalorder %s268, %s269
      %p278 = scmp.eq.s32.totalorder %s40, 0
      %p279 = por %p277, %p278
      %p280 = scmp.ne.s32.totalorder %s268, %s269
      %p281 = scmp.eq.s32.totalorder %s41, 3
      %p282 = por %p280, %p281
      %p284 = scmp.ne.s32.totalorder %s269, %s283
      %p285 = scmp.eq.s32.totalorder %s41, 0
      %p286 = por %p284, %p285
      %s288 = sadd.s32 %s287, 1
      %p291 = scmp.eq.s32.totalorder %s35, 3
      %p292 = scmp.ne.s32.totalorder %s287, %s289
      %p293 = scmp.eq.s32.totalorder %s35, 0
      %p294 = por %p292, %p293
      %p295 = scmp.ne.s32.totalorder %s287, %s289
      %p296 = scmp.eq.s32.totalorder %s40, 3
      %p297 = por %p295, %p296
      %p298 = scmp.ne.s32.totalorder %s289, %s290
      %p299 = scmp.eq.s32.totalorder %s40, 0
      %p300 = por %p298, %p299
      %p301 = scmp.ne.s32.totalorder %s289, %s290
      %p302 = scmp.eq.s32.totalorder %s41, 3
      %p303 = por %p301, %p302
      %p305 = scmp.ne.s32.totalorder %s290, %s304
      %p306 = scmp.eq.s32.totalorder %s41, 0
      %p307 = por %p305, %p306
      %s309 = sadd.s32 %s308, 1
      %p312 = scmp.eq.s32.totalorder %s35, 3
      %p313 = scmp.ne.s32.totalorder %s308, %s310
      %p314 = scmp.eq.s32.totalorder %s35, 0
      %p315 = por %p313, %p314
      %p316 = scmp.ne.s32.totalorder %s308, %s310
      %p317 = scmp.eq.s32.totalorder %s40, 3
      %p318 = por %p316, %p317
      %p319 = scmp.ne.s32.totalorder %s310, %s311
      %p320 = scmp.eq.s32.totalorder %s40, 0
      %p321 = por %p319, %p320
      %p322 = scmp.ne.s32.totalorder %s310, %s311
      %p323 = scmp.eq.s32.totalorder %s41, 3
      %p324 = por %p322, %p323
      %p326 = scmp.ne.s32.totalorder %s311, %s325
      %p327 = scmp.eq.s32.totalorder %s41, 0
      %p328 = por %p326, %p327
      %s330 = sadd.s32 %s329, 1
      %p333 = scmp.eq.s32.totalorder %s35, 3
      %p334 = scmp.ne.s32.totalorder %s329, %s331
      %p335 = scmp.eq.s32.totalorder %s35, 0
      %p336 = por %p334, %p335
      %p337 = scmp.ne.s32.totalorder %s329, %s331
      %p338 = scmp.eq.s32.totalorder %s40, 3
      %p339 = por %p337, %p338
      %p340 = scmp.ne.s32.totalorder %s331, %s332
      %p341 = scmp.eq.s32.totalorder %s40, 0
      %p342 = por %p340, %p341
      %p343 = scmp.ne.s32.totalorder %s331, %s332
      %p344 = scmp.eq.s32.totalorder %s41, 3
      %p345 = por %p343, %p344
      %p347 = scmp.ne.s32.totalorder %s332, %s346
      %p348 = scmp.eq.s32.totalorder %s41, 0
      %p349 = por %p347, %p348
      %s350 = ssub.s32 %s42, %s54
      %s351 = ssub.s32 %s43, %s50
      %s352 = sor.u32 %s350, %s351
      %p353 = scmp.eq.s32.totalorder %s352, 0
      %s355 = sadd.s32 %s354, 1
      %s356 = scalar_select %p353, %s354, %s355
      %p359 = pneg %p353
      %p360 = scmp.eq.s32.totalorder %s35, 3
      %p361 = por %p359, %p360
      %p362 = scmp.ne.s32.totalorder %s354, %s357
      %p363 = scmp.eq.s32.totalorder %s35, 0
      %p364 = por %p362, %p363
      %p365 = scmp.ne.s32.totalorder %s354, %s357
      %p366 = scmp.eq.s32.totalorder %s40, 3
      %p367 = por %p365, %p366
      %p368 = scmp.ne.s32.totalorder %s357, %s358
      %p369 = scmp.eq.s32.totalorder %s40, 0
      %p370 = por %p368, %p369
      %p371 = scmp.ne.s32.totalorder %s357, %s358
      %p372 = scmp.eq.s32.totalorder %s41, 3
      %p373 = por %p371, %p372
      %p375 = scmp.ne.s32.totalorder %s358, %s374
      %p376 = scmp.eq.s32.totalorder %s41, 0
      %p377 = por %p375, %p376
      %p378 = scmp.le.s32.totalorder 1, %s35
      %p379 = scmp.lt.s32.totalorder %s35, 5
      %p380 = pnand %p378, %p379
      %p381 = pneg %p380
      // Predicated region
      $region9: #{tpu_custom_call.1} parent=5 // pred_check
        _
      $region10: #{tpu_custom_call.1} parent=5 // pred_check_branch
        %383 = sbr.rel (%p380) target = $region12
      $region11: #{tpu_custom_call.1} parent=5 // pred_region
        %s384 = ssub.s32 %s35, 1
        // Predicated region
        $region13: #{tpu_custom_call.1} parent=11 // pred_check
          %p385 = pneg %p174
        $region14: #{tpu_custom_call.1} parent=11 // pred_check_branch
          %387 = sbr.rel (%p385) target = $region16
        $region15: #{tpu_custom_call.1} parent=11 // pred_region
          %s389 = ssub.s32 512, 512
          %390 = vsyncadd [#allocation11], %s389
          %s391 = sshll.u32 [#allocation12], 4
          %s392 = int_to_ptr.vmem [resolvable:$true] %s391
          %397 = dma.hbm_to_vmem [thread:$0]  %s4, 512, %s392, [#allocation11], 128, 128, 8
        $region16: #{tpu_custom_call.1} parent=11 // pred_fallthru
          _
        // Predicated region
        $region17: #{tpu_custom_call.1} parent=11 // pred_check
          %p398 = pneg %p195
        $region18: #{tpu_custom_call.1} parent=11 // pred_check_branch
          %400 = sbr.rel (%p398) target = $region20
        $region19: #{tpu_custom_call.1} parent=11 // pred_region
          %s402 = ssub.s32 512, 512
          %403 = vsyncadd [#allocation14], %s402
          %s404 = sshll.u32 [#allocation13], 4
          %s405 = int_to_ptr.vmem [resolvable:$true] %s404
          %410 = dma.hbm_to_vmem [thread:$0]  %s5, 512, %s405, [#allocation14], 128, 128, 8
        $region20: #{tpu_custom_call.1} parent=11 // pred_fallthru
          _
        // Predicated region
        $region21: #{tpu_custom_call.1} parent=11 // pred_check
          %p411 = pneg %p216
        $region22: #{tpu_custom_call.1} parent=11 // pred_check_branch
          %413 = sbr.rel (%p411) target = $region24
        $region23: #{tpu_custom_call.1} parent=11 // pred_region
          %s415 = ssub.s32 64, 64
          %416 = vsyncadd [#allocation14], %s415
          %s418 = sshll.u32 [#allocation15], 4
          %s419 = int_to_ptr.vmem [resolvable:$true] %s418
          %421 = dma.hbm_to_vmem [thread:$0]  %s6, 64, %s419, [#allocation14]
        $region24: #{tpu_custom_call.1} parent=11 // pred_fallthru
          _
        // Predicated region
        $region25: #{tpu_custom_call.1} parent=11 // pred_check
          %p422 = pneg %p237
        $region26: #{tpu_custom_call.1} parent=11 // pred_check_branch
          %424 = sbr.rel (%p422) target = $region28
        $region27: #{tpu_custom_call.1} parent=11 // pred_region
          %s426 = ssub.s32 64, 64
          %427 = vsyncadd [#allocation17], %s426
          %s429 = sshll.u32 [#allocation16], 4
          %s430 = int_to_ptr.vmem [resolvable:$true] %s429
          %432 = dma.hbm_to_vmem [thread:$0]  %s7, 64, %s430, [#allocation17]
        $region28: #{tpu_custom_call.1} parent=11 // pred_fallthru
          _
        // Predicated region
        $region29: #{tpu_custom_call.1} parent=11 // pred_check
          %p433 = pneg %p258
        $region30: #{tpu_custom_call.1} parent=11 // pred_check_branch
          %435 = sbr.rel (%p433) target = $region32
        $region31: #{tpu_custom_call.1} parent=11 // pred_region
          %s437 = ssub.s32 64, 64
          %438 = vsyncadd [#allocation17], %s437
          %s440 = sshll.u32 [#allocation18], 4
          %s441 = int_to_ptr.vmem [resolvable:$true] %s440
          %443 = dma.hbm_to_vmem [thread:$0]  %s8, 64, %s441, [#allocation17]
        $region32: #{tpu_custom_call.1} parent=11 // pred_fallthru
          _
        // Predicated region
        $region33: #{tpu_custom_call.1} parent=11 // pred_check
          %p444 = pneg %p279
        $region34: #{tpu_custom_call.1} parent=11 // pred_check_branch
          %446 = sbr.rel (%p444) target = $region36
        $region35: #{tpu_custom_call.1} parent=11 // pred_region
          %s448 = ssub.s32 64, 64
          %449 = vsyncadd [#allocation20], %s448
          %s451 = sshll.u32 [#allocation19], 4
          %s452 = int_to_ptr.vmem [resolvable:$true] %s451
          %454 = dma.hbm_to_vmem [thread:$0]  %s9, 64, %s452, [#allocation20]
        $region36: #{tpu_custom_call.1} parent=11 // pred_fallthru
          _
        // Predicated region
        $region37: #{tpu_custom_call.1} parent=11 // pred_check
          %p455 = pneg %p300
        $region38: #{tpu_custom_call.1} parent=11 // pred_check_branch
          %457 = sbr.rel (%p455) target = $region40
        $region39: #{tpu_custom_call.1} parent=11 // pred_region
          %s459 = ssub.s32 64, 64
          %460 = vsyncadd [#allocation20], %s459
          %s462 = sshll.u32 [#allocation21], 4
          %s463 = int_to_ptr.vmem [resolvable:$true] %s462
          %465 = dma.hbm_to_vmem [thread:$0]  %s10, 64, %s463, [#allocation20]
        $region40: #{tpu_custom_call.1} parent=11 // pred_fallthru
          _
        // Predicated region
        $region41: #{tpu_custom_call.1} parent=11 // pred_check
          %p466 = pneg %p321
        $region42: #{tpu_custom_call.1} parent=11 // pred_check_branch
          %468 = sbr.rel (%p466) target = $region44
        $region43: #{tpu_custom_call.1} parent=11 // pred_region
          %s470 = ssub.s32 256, 256
          %471 = vsyncadd [#allocation23], %s470
          %s472 = sshll.u32 [#allocation22], 4
          %s473 = int_to_ptr.vmem [resolvable:$true] %s472
          %478 = dma.hbm_to_vmem [thread:$0]  %s11, 256, %s473, [#allocation23], 64, 64, 4
        $region44: #{tpu_custom_call.1} parent=11 // pred_fallthru
          _
        // Predicated region
        $region45: #{tpu_custom_call.1} parent=11 // pred_check
          %p479 = pneg %p342
        $region46: #{tpu_custom_call.1} parent=11 // pred_check_branch
          %481 = sbr.rel (%p479) target = $region48
        $region47: #{tpu_custom_call.1} parent=11 // pred_region
          %s483 = ssub.s32 16, 16
          %484 = vsyncadd [#allocation23], %s483
          %s486 = sshll.u32 [#allocation24], 4
          %s487 = int_to_ptr.vmem [resolvable:$true] %s486
          %489 = dma.hbm_to_vmem [thread:$0]  %s12, 16, %s487, [#allocation23]
        $region48: #{tpu_custom_call.1} parent=11 // pred_fallthru
          _
      $region12: #{tpu_custom_call.1} parent=5 // pred_fallthru
        _
      %p490 = scmp.lt.s32.totalorder %s35, 4
      // Predicated region
      $region49: #{tpu_custom_call.1} parent=5 // pred_check
        %p491 = pneg %p490
      $region50: #{tpu_custom_call.1} parent=5 // pred_check_branch
        %493 = sbr.rel (%p491) target = $region52
      $region51: #{tpu_custom_call.1} parent=5 // pred_region
        // Predicated region
        $region53: #{tpu_custom_call.1} parent=51 // pred_check
          %p494 = pneg %p69
        $region54: #{tpu_custom_call.1} parent=51 // pred_check_branch
          %496 = sbr.rel (%p494) target = $region56
        $region55: #{tpu_custom_call.1} parent=51 // pred_region
          #allocation27 [shape = 'u32[6]{0}', space=smem, size = 0x18, scoped, tag = 'DMA stride descriptor']
          %s497 = sand.u32 %s59, 1
          %s498 = scalar_lea.sflag [#allocation5], %s497
          %s499 = sand.u32 %s59, 1
          %s500 = smul.addr %s499, 32
          %s501 = scalar_lea.vmem [#allocation4], %s500
          %s502 = smul.u32 2, %s43
          %s504 = ssub.s32 512, 512
          %505 = vsyncadd %s498, %s504
          %s506 = smul.addr %s42, 16
          %s507 = sadd.s32 %s502, %s506
          %s508 = smul.addr %s507, 64
          %s509 = scalar_lea.hbm %s0, %s508
          %s511 = sshll.u32 1, 14
          %s512 = sxor.u32 4294967295, %s511
          %s514 = sld [smem:[#allocation0]]
          %s515 = sadd.s32 2, %s514
          %s517 = sshll.u32 7, 26
          %s518 = sxor.u32 4294967295, %s517
          %s519 = sand.u32 0, %s518
          %s520 = sshll.u32 %s515, 26
          %s521 = sor.u32 %s519, %s520
          %s522 = sshll.u32 %s501, 4
          %s523 = int_to_ptr.vmem [resolvable:$true] %s522
          %529 = sst [smem:[#allocation27]] 256
          %s530 = scalar_lea.smem [#allocation27], 1
          %531 = sst [smem:[%s530]] 128
          %s532 = scalar_lea.smem [#allocation27], 2
          %533 = sst [smem:[%s532]] 2
          %s534 = scalar_lea.smem [#allocation27], 3
          %535 = sst [smem:[%s534]] 64
          %s536 = scalar_lea.smem [#allocation27], 4
          %537 = sst [smem:[%s536]] 64
          %s538 = scalar_lea.smem [#allocation27], 5
          %539 = sst [smem:[%s538]] 4
          %541 = dma.general %s509, 512, %s523, %s498, [#allocation26], [#allocation27], %s521, 0
        $region56: #{tpu_custom_call.1} parent=51 // pred_fallthru
          _
        // Predicated region
        $region57: #{tpu_custom_call.1} parent=51 // pred_check
          %p542 = pneg %p95
        $region58: #{tpu_custom_call.1} parent=51 // pred_check_branch
          %544 = sbr.rel (%p542) target = $region60
        $region59: #{tpu_custom_call.1} parent=51 // pred_region
          %s545 = sand.u32 %s35, 1
          %s546 = scalar_lea.sflag [#allocation8], %s545
          %s547 = sand.u32 %s85, 1
          %s548 = smul.addr %s547, 64
          %s549 = scalar_lea.vmem [#allocation7], %s548
          %s551 = ssub.s32 1024, 1024
          %552 = vsyncadd %s546, %s551
          %s553 = smul.addr %s42, 16
          %s554 = smul.addr %s553, 64
          %s555 = scalar_lea.hbm %s1, %s554
          %s556 = sshll.u32 %s549, 4
          %s557 = int_to_ptr.vmem [resolvable:$true] %s556
          %562 = dma.hbm_to_vmem [thread:$0]  %s555, 1024, %s557, %s546, 64, 64, 4
        $region60: #{tpu_custom_call.1} parent=51 // pred_fallthru
          _
        // Predicated region
        $region61: #{tpu_custom_call.1} parent=51 // pred_check
          %p563 = pneg %p121
        $region62: #{tpu_custom_call.1} parent=51 // pred_check_branch
          %565 = sbr.rel (%p563) target = $region64
        $region63: #{tpu_custom_call.1} parent=51 // pred_region
          %s566 = sand.u32 %s35, 1
          %s567 = scalar_lea.sflag [#allocation8], %s566
          %s568 = sand.u32 %s111, 1
          %s569 = smul.addr %s568, 64
          %s570 = scalar_lea.vmem [#allocation9], %s569
          %s572 = ssub.s32 1024, 1024
          %573 = vsyncadd %s567, %s572
          %s574 = smul.addr %s42, 16
          %s575 = smul.addr %s574, 64
          %s576 = scalar_lea.hbm %s2, %s575
          %s577 = sshll.u32 %s570, 4
          %s578 = int_to_ptr.vmem [resolvable:$true] %s577
          %583 = dma.hbm_to_vmem [thread:$0]  %s576, 1024, %s578, %s567, 64, 64, 4
        $region64: #{tpu_custom_call.1} parent=51 // pred_fallthru
          _
        // Predicated region
        $region65: #{tpu_custom_call.1} parent=51 // pred_check
          %p584 = pneg %p147
        $region66: #{tpu_custom_call.1} parent=51 // pred_check_branch
          %586 = sbr.rel (%p584) target = $region68
        $region67: #{tpu_custom_call.1} parent=51 // pred_region
          %s587 = sand.u32 %s35, 1
          %s588 = scalar_lea.sflag [#allocation11], %s587
          %s589 = sand.u32 %s137, 1
          %s590 = smul.addr %s589, 8
          %s591 = scalar_lea.vmem [#allocation10], %s590
          %s592 = smul.u32 2, %s43
          %s594 = ssub.s32 128, 128
          %595 = vsyncadd %s588, %s594
          %s596 = smul.addr %s592, 64
          %s597 = scalar_lea.hbm %s3, %s596
          %s598 = sshll.u32 %s591, 4
          %s599 = int_to_ptr.vmem [resolvable:$true] %s598
          %604 = dma.hbm_to_vmem [thread:$0]  %s597, 128, %s599, %s588, 64, 64, 4
        $region68: #{tpu_custom_call.1} parent=51 // pred_fallthru
          _
      $region52: #{tpu_custom_call.1} parent=5 // pred_fallthru
        _
      %p605 = scmp.le.s32.totalorder 1, %s35
      %p606 = scmp.lt.s32.totalorder %s35, 5
      %p607 = pnand %p605, %p606
      %p608 = pneg %p607
      // Predicated region
      $region69: #{tpu_custom_call.1} parent=5 // pred_check
        _
      $region70: #{tpu_custom_call.1} parent=5 // pred_check_branch
        %610 = sbr.rel (%p607) target = $region72
      $region71: #{tpu_custom_call.1} parent=5 // pred_region
        %s611 = ssub.s32 %s35, 1
        %s612 = sand.u32 %s62, 1
        %s613 = scalar_lea.sflag [#allocation5], %s612
        %s614 = sand.u32 %s62, 1
        %s615 = smul.addr %s614, 32
        %s616 = scalar_lea.vmem [#allocation4], %s615
        // Predicated region
        $region73: #{tpu_custom_call.1} parent=71 // pred_check
          %p617 = pneg %p75
        $region74: #{tpu_custom_call.1} parent=71 // pred_check_branch
          %619 = sbr.rel (%p617) target = $region76
        $region75: #{tpu_custom_call.1} parent=71 // pred_region
          %620 = dma.done %s613, 512
        $region76: #{tpu_custom_call.1} parent=71 // pred_fallthru
          _
        %s621 = sand.u32 %s40, 1
        %s622 = scalar_lea.sflag [#allocation8], %s621
        %s623 = sand.u32 %s88, 1
        %s624 = smul.addr %s623, 64
        %s625 = scalar_lea.vmem [#allocation7], %s624
        // Predicated region
        $region77: #{tpu_custom_call.1} parent=71 // pred_check
          %p626 = pneg %p101
        $region78: #{tpu_custom_call.1} parent=71 // pred_check_branch
          %628 = sbr.rel (%p626) target = $region80
        $region79: #{tpu_custom_call.1} parent=71 // pred_region
          %629 = dma.done %s622, 1024
        $region80: #{tpu_custom_call.1} parent=71 // pred_fallthru
          _
        %s630 = sand.u32 %s40, 1
        %s631 = scalar_lea.sflag [#allocation8], %s630
        %s632 = sand.u32 %s114, 1
        %s633 = smul.addr %s632, 64
        %s634 = scalar_lea.vmem [#allocation9], %s633
        // Predicated region
        $region81: #{tpu_custom_call.1} parent=71 // pred_check
          %p635 = pneg %p127
        $region82: #{tpu_custom_call.1} parent=71 // pred_check_branch
          %637 = sbr.rel (%p635) target = $region84
        $region83: #{tpu_custom_call.1} parent=71 // pred_region
          %638 = dma.done %s631, 1024
        $region84: #{tpu_custom_call.1} parent=71 // pred_fallthru
          _
        %s639 = sand.u32 %s40, 1
        %s640 = scalar_lea.sflag [#allocation11], %s639
        %s641 = sand.u32 %s140, 1
        %s642 = smul.addr %s641, 8
        %s643 = scalar_lea.vmem [#allocation10], %s642
        // Predicated region
        $region85: #{tpu_custom_call.1} parent=71 // pred_check
          %p644 = pneg %p153
        $region86: #{tpu_custom_call.1} parent=71 // pred_check_branch
          %646 = sbr.rel (%p644) target = $region88
        $region87: #{tpu_custom_call.1} parent=71 // pred_region
          %647 = dma.done %s640, 128
        $region88: #{tpu_custom_call.1} parent=71 // pred_fallthru
          _
        // Predicated region
        $region89: #{tpu_custom_call.1} parent=71 // pred_check
          %p648 = pneg %p174
        $region90: #{tpu_custom_call.1} parent=71 // pred_check_branch
          %650 = sbr.rel (%p648) target = $region92
        $region91: #{tpu_custom_call.1} parent=71 // pred_region
          %651 = dma.done [#allocation11], 512
        $region92: #{tpu_custom_call.1} parent=71 // pred_fallthru
          _
        // Predicated region
        $region93: #{tpu_custom_call.1} parent=71 // pred_check
          %p652 = pneg %p195
        $region94: #{tpu_custom_call.1} parent=71 // pred_check_branch
          %654 = sbr.rel (%p652) target = $region96
        $region95: #{tpu_custom_call.1} parent=71 // pred_region
          %655 = dma.done [#allocation14], 512
        $region96: #{tpu_custom_call.1} parent=71 // pred_fallthru
          _
        // Predicated region
        $region97: #{tpu_custom_call.1} parent=71 // pred_check
          %p656 = pneg %p216
        $region98: #{tpu_custom_call.1} parent=71 // pred_check_branch
          %658 = sbr.rel (%p656) target = $region100
        $region99: #{tpu_custom_call.1} parent=71 // pred_region
          %659 = dma.done [#allocation14], 64
        $region100: #{tpu_custom_call.1} parent=71 // pred_fallthru
          _
        // Predicated region
        $region101: #{tpu_custom_call.1} parent=71 // pred_check
          %p660 = pneg %p237
        $region102: #{tpu_custom_call.1} parent=71 // pred_check_branch
          %662 = sbr.rel (%p660) target = $region104
        $region103: #{tpu_custom_call.1} parent=71 // pred_region
          %663 = dma.done [#allocation17], 64
        $region104: #{tpu_custom_call.1} parent=71 // pred_fallthru
          _
        // Predicated region
        $region105: #{tpu_custom_call.1} parent=71 // pred_check
          %p664 = pneg %p258
        $region106: #{tpu_custom_call.1} parent=71 // pred_check_branch
          %666 = sbr.rel (%p664) target = $region108
        $region107: #{tpu_custom_call.1} parent=71 // pred_region
          %667 = dma.done [#allocation17], 64
        $region108: #{tpu_custom_call.1} parent=71 // pred_fallthru
          _
        // Predicated region
        $region109: #{tpu_custom_call.1} parent=71 // pred_check
          %p668 = pneg %p279
        $region110: #{tpu_custom_call.1} parent=71 // pred_check_branch
          %670 = sbr.rel (%p668) target = $region112
        $region111: #{tpu_custom_call.1} parent=71 // pred_region
          %671 = dma.done [#allocation20], 64
        $region112: #{tpu_custom_call.1} parent=71 // pred_fallthru
          _
        // Predicated region
        $region113: #{tpu_custom_call.1} parent=71 // pred_check
          %p672 = pneg %p300
        $region114: #{tpu_custom_call.1} parent=71 // pred_check_branch
          %674 = sbr.rel (%p672) target = $region116
        $region115: #{tpu_custom_call.1} parent=71 // pred_region
          %675 = dma.done [#allocation20], 64
        $region116: #{tpu_custom_call.1} parent=71 // pred_fallthru
          _
        // Predicated region
        $region117: #{tpu_custom_call.1} parent=71 // pred_check
          %p676 = pneg %p321
        $region118: #{tpu_custom_call.1} parent=71 // pred_check_branch
          %678 = sbr.rel (%p676) target = $region120
        $region119: #{tpu_custom_call.1} parent=71 // pred_region
          %679 = dma.done [#allocation23], 256
        $region120: #{tpu_custom_call.1} parent=71 // pred_fallthru
          _
        // Predicated region
        $region121: #{tpu_custom_call.1} parent=71 // pred_check
          %p680 = pneg %p342
        $region122: #{tpu_custom_call.1} parent=71 // pred_check_branch
          %682 = sbr.rel (%p680) target = $region124
        $region123: #{tpu_custom_call.1} parent=71 // pred_region
          %683 = dma.done [#allocation23], 16
        $region124: #{tpu_custom_call.1} parent=71 // pred_fallthru
          _
        %s684 = sand.u32 %s62, 1
        %s685 = scalar_lea.sflag [#allocation5], %s684
        %s686 = sand.u32 %s62, 1
        %s687 = smul.addr %s686, 32
        %s688 = scalar_lea.vmem [#allocation4], %s687
        %p689 = pneg %p75
        %p690 = pneg %p72
        %s691 = sand.u32 %s40, 1
        %s692 = scalar_lea.sflag [#allocation8], %s691
        %s693 = sand.u32 %s88, 1
        %s694 = smul.addr %s693, 64
        %s695 = scalar_lea.vmem [#allocation7], %s694
        %p696 = pneg %p101
        %p697 = pneg %p98
        %s698 = sand.u32 %s40, 1
        %s699 = scalar_lea.sflag [#allocation8], %s698
        %s700 = sand.u32 %s114, 1
        %s701 = smul.addr %s700, 64
        %s702 = scalar_lea.vmem [#allocation9], %s701
        %p703 = pneg %p127
        %p704 = pneg %p124
        %s705 = sand.u32 %s40, 1
        %s706 = scalar_lea.sflag [#allocation11], %s705
        %s707 = sand.u32 %s140, 1
        %s708 = smul.addr %s707, 8
        %s709 = scalar_lea.vmem [#allocation10], %s708
        %p710 = pneg %p153
        %p711 = pneg %p150
        %p712 = pneg %p174
        %p713 = pneg %p171
        %p714 = pneg %p195
        %p715 = pneg %p192
        %p716 = pneg %p216
        %p717 = pneg %p213
        %p718 = pneg %p237
        %p719 = pneg %p234
        %p720 = pneg %p258
        %p721 = pneg %p255
        %p722 = pneg %p279
        %p723 = pneg %p276
        %p724 = pneg %p300
        %p725 = pneg %p297
        %p726 = pneg %p321
        %p727 = pneg %p318
        %p728 = pneg %p342
        %p729 = pneg %p339
        %p730 = pneg %p370
        %p731 = pneg %p367
        %s732 = sand.u32 %s357, 1
        %s733 = scalar_lea.sflag [#allocation6], %s732
        %s734 = sand.u32 %s357, 1
        %s735 = smul.addr %s734, 16
        %s736 = scalar_lea.vmem [#allocation25], %s735
        %s737 = smul.u32 2, %s45
        %s738 = smul.u32 2, %s45
        %s739 = smul.u32 2, %s45
        %p741 = scmp.eq.s32.totalorder %s45, 0
        // Predicated region
        $region125: #{tpu_custom_call.1} parent=71 // pred_check
          %p742 = pneg %p741
        $region126: #{tpu_custom_call.1} parent=71 // pred_check_branch
          %744 = sbr.rel (%p742) target = $region128
        $region127: #{tpu_custom_call.1} parent=71 // pred_region
          %v745 = vld [vmem:[#allocation12] sm:$0xff]
          %v746 = vld [vmem:[#allocation12 + $0x8] sm:$0xff]
          %v747 = vld [vmem:[#allocation12 + $0x10] sm:$0xff]
          %v748 = vld [vmem:[#allocation12 + $0x18] sm:$0xff]
          %v749 = vld [vmem:[#allocation13] sm:$0xff]
          %v750 = vld [vmem:[#allocation13 + $0x8] sm:$0xff]
          %v751 = vld [vmem:[#allocation13 + $0x10] sm:$0xff]
          %v752 = vld [vmem:[#allocation13 + $0x18] sm:$0xff]
          %v753 = vld [vmem:[%s625] sm:$0xf]
          %v754 = vld [vmem:[%s625 + $0x4] sm:$0xf]
          %v755 = vld [vmem:[%s625 + $0x8] sm:$0xf]
          %v756 = vld [vmem:[%s625 + $0xc] sm:$0xf]
          %v757 = vld [vmem:[%s625 + $0x10] sm:$0xf]
          %v758 = vld [vmem:[%s625 + $0x14] sm:$0xf]
          %v759 = vld [vmem:[%s625 + $0x18] sm:$0xf]
          %v760 = vld [vmem:[%s625 + $0x1c] sm:$0xf]
          %v761 = vld [vmem:[%s625 + $0x20] sm:$0xf]
          %v762 = vld [vmem:[%s625 + $0x24] sm:$0xf]
          %v763 = vld [vmem:[%s625 + $0x28] sm:$0xf]
          %v764 = vld [vmem:[%s625 + $0x2c] sm:$0xf]
          %v765 = vld [vmem:[%s625 + $0x30] sm:$0xf]
          %v766 = vld [vmem:[%s625 + $0x34] sm:$0xf]
          %v767 = vld [vmem:[%s625 + $0x38] sm:$0xf]
          %v768 = vld [vmem:[%s625 + $0x3c] sm:$0xf]
          %v769 = vunpack.c.l.bf16 %v753
          %v770 = vunpack.c.l.bf16 %v754
          %v771 = vunpack.c.l.bf16 %v755
          %v772 = vunpack.c.l.bf16 %v756
          %v773 = vunpack.c.l.bf16 %v757
          %v774 = vunpack.c.l.bf16 %v758
          %v775 = vunpack.c.l.bf16 %v759
          %v776 = vunpack.c.l.bf16 %v760
          %v777 = vunpack.c.l.bf16 %v761
          %v778 = vunpack.c.l.bf16 %v762
          %v779 = vunpack.c.l.bf16 %v763
          %v780 = vunpack.c.l.bf16 %v764
          %v781 = vunpack.c.l.bf16 %v765
          %v782 = vunpack.c.l.bf16 %v766
          %v783 = vunpack.c.l.bf16 %v767
          %v784 = vunpack.c.l.bf16 %v768
          %v785 = vmul.f32 %v769, %v745
          %v786 = vmul.f32 %v770, %v746
          %v787 = vmul.f32 %v771, %v747
          %v788 = vmul.f32 %v772, %v748
          %v789 = vmul.f32 %v773, %v745
          %v790 = vmul.f32 %v774, %v746
          %v791 = vmul.f32 %v775, %v747
          %v792 = vmul.f32 %v776, %v748
          %v793 = vmul.f32 %v777, %v745
          %v794 = vmul.f32 %v778, %v746
          %v795 = vmul.f32 %v779, %v747
          %v796 = vmul.f32 %v780, %v748
          %v797 = vmul.f32 %v781, %v745
          %v798 = vmul.f32 %v782, %v746
          %v799 = vmul.f32 %v783, %v747
          %v800 = vmul.f32 %v784, %v748
          %v801 = vpack.c.bf16 %v786, %v785
          %v802 = vpack.c.bf16 %v788, %v787
          %v803 = vpack.c.bf16 %v790, %v789
          %v804 = vpack.c.bf16 %v792, %v791
          %v805 = vpack.c.bf16 %v794, %v793
          %v806 = vpack.c.bf16 %v796, %v795
          %v807 = vpack.c.bf16 %v798, %v797
          %v808 = vpack.c.bf16 %v800, %v799
          %v809 = vmul.f32 %v769, %v749
          %v810 = vmul.f32 %v770, %v750
          %v811 = vmul.f32 %v771, %v751
          %v812 = vmul.f32 %v772, %v752
          %v813 = vmul.f32 %v773, %v749
          %v814 = vmul.f32 %v774, %v750
          %v815 = vmul.f32 %v775, %v751
          %v816 = vmul.f32 %v776, %v752
          %v817 = vmul.f32 %v777, %v749
          %v818 = vmul.f32 %v778, %v750
          %v819 = vmul.f32 %v779, %v751
          %v820 = vmul.f32 %v780, %v752
          %v821 = vmul.f32 %v781, %v749
          %v822 = vmul.f32 %v782, %v750
          %v823 = vmul.f32 %v783, %v751
          %v824 = vmul.f32 %v784, %v752
          %v825 = vpack.c.bf16 %v810, %v809
          %v826 = vpack.c.bf16 %v812, %v811
          %v827 = vpack.c.bf16 %v814, %v813
          %v828 = vpack.c.bf16 %v816, %v815
          %v829 = vpack.c.bf16 %v818, %v817
          %v830 = vpack.c.bf16 %v820, %v819
          %v831 = vpack.c.bf16 %v822, %v821
          %v832 = vpack.c.bf16 %v824, %v823
          %v833 = vld [vmem:[#allocation18] sm:$0xf]
          %v834 = vld [vmem:[#allocation19] sm:$0xf]
          %vm835 = vcmask 64512
          %v837 = vsel %vm835, %v825, 0
          %v840 = vsel %vm835, %v826, 0
          %v843 = vsel %vm835, %v827, 0
          %v846 = vsel %vm835, %v828, 0
          %v849 = vsel %vm835, %v829, 0
          %v852 = vsel %vm835, %v830, 0
          %v855 = vsel %vm835, %v831, 0
          %v858 = vsel %vm835, %v832, 0
          %vm860 = vcmask 1043456
          %v862 = vsel %vm860, %v834, 0
          %864 = vmatprep.subr.bf16.mxu0 0
          %865 = vmatpush1.bf16.msra.mxu0 %v862
          %866 = vmatprep.subr.bf16.mxu0 0
          %867 = vmatpush1.bf16.msra.mxu0 0
          %868 = vmatprep.subr.bf16.mxu0 0
          %869 = vmatpush1.bf16.msra.mxu0 0
          %870 = vmatprep.subr.bf16.mxu0 0
          %871 = vmatpush1.bf16.msra.mxu0 0
          %872 = vmatprep.subr.bf16.mxu0 0
          %873 = vmatpush1.bf16.msra.mxu0 0
          %874 = vmatprep.subr.bf16.mxu0 0
          %875 = vmatpush1.bf16.msra.mxu0 0
          %876 = vmatprep.subr.bf16.mxu0 0
          %877 = vmatpush1.bf16.msra.mxu0 0
          %878 = vmatprep.subr.bf16.mxu0 0
          %879 = vmatpush1.bf16.msra.mxu0 0
          %880 = vmatprep.subr.bf16.mxu0 0
          %881 = vmatpush1.bf16.msra.mxu0 0
          %882 = vmatprep.subr.bf16.mxu0 0
          %883 = vmatpush1.bf16.msra.mxu0 0
          %884 = vmatprep.subr.bf16.mxu0 0
          %885 = vmatpush1.bf16.msra.mxu0 0
          %886 = vmatprep.subr.bf16.mxu0 0
          %887 = vmatpush1.bf16.msra.mxu0 0
          %888 = vmatprep.subr.bf16.mxu0 0
          %889 = vmatpush1.bf16.msra.mxu0 0
          %890 = vmatprep.subr.bf16.mxu0 0
          %891 = vmatpush1.bf16.msra.mxu0 0
          %892 = vmatprep.subr.bf16.mxu0 0
          %893 = vmatpush1.bf16.msra.mxu0 0
          %894 = vmatprep.subr.bf16.mxu0 0
          %895 = vmatpush1.bf16.msra.mxu0 0
          %896 = vmatprep.mubr.bf16.mxu0 0
          %897 = vmatmul.mubr.bf16.gmra.mrb[0].mxu0 %v837
          %v898 = vpop.f32.mrb[0].mxu0
          %v899 = vadd.f32 0.0, %v898
          %v900 = vpop.f32.mrb[0].mxu0
          %v901 = vpop.f32.mrb[0].mxu0
          %v902 = vadd.f32 0.0, %v901
          %v903 = vpop.f32.mrb[0].mxu0
          %904 = vmatprep.mubr.bf16.mxu0 0
          %905 = vmatmul.mubr.bf16.gmra.mrb[0].mxu0 %v840
          %v906 = vpop.f32.mrb[0].mxu0
          %v907 = vadd.f32 0.0, %v906
          %v908 = vpop.f32.mrb[0].mxu0
          %v909 = vpop.f32.mrb[0].mxu0
          %v910 = vadd.f32 0.0, %v909
          %v911 = vpop.f32.mrb[0].mxu0
          %912 = vmatprep.mubr.bf16.mxu0 0
          %913 = vmatmul.mubr.bf16.gmra.mrb[0].mxu0 %v843
          %v914 = vpop.f32.mrb[0].mxu0
          %v915 = vadd.f32 0.0, %v914
          %v916 = vpop.f32.mrb[0].mxu0
          %v917 = vpop.f32.mrb[0].mxu0
          %v918 = vadd.f32 0.0, %v917
          %v919 = vpop.f32.mrb[0].mxu0
          %920 = vmatprep.mubr.bf16.mxu0 0
          %921 = vmatmul.mubr.bf16.gmra.mrb[0].mxu0 %v846
          %v922 = vpop.f32.mrb[0].mxu0
          %v923 = vadd.f32 0.0, %v922
          %v924 = vpop.f32.mrb[0].mxu0
          %v925 = vpop.f32.mrb[0].mxu0
          %v926 = vadd.f32 0.0, %v925
          %v927 = vpop.f32.mrb[0].mxu0
          %928 = vmatprep.mubr.bf16.mxu0 0
          %929 = vmatmul.mubr.bf16.gmra.mrb[0].mxu0 %v849
          %v930 = vpop.f32.mrb[0].mxu0
          %v931 = vadd.f32 0.0, %v930
          %v932 = vpop.f32.mrb[0].mxu0
          %v933 = vpop.f32.mrb[0].mxu0
          %v934 = vadd.f32 0.0, %v933
          %v935 = vpop.f32.mrb[0].mxu0
          %936 = vmatprep.mubr.bf16.mxu0 0
          %937 = vmatmul.mubr.bf16.gmra.mrb[0].mxu0 %v852
          %v938 = vpop.f32.mrb[0].mxu0
          %v939 = vadd.f32 0.0, %v938
          %v940 = vpop.f32.mrb[0].mxu0
          %v941 = vpop.f32.mrb[0].mxu0
          %v942 = vadd.f32 0.0, %v941
          %v943 = vpop.f32.mrb[0].mxu0
          %944 = vmatprep.mubr.bf16.mxu0 0
          %945 = vmatmul.mubr.bf16.gmra.mrb[0].mxu0 %v855
          %v946 = vpop.f32.mrb[0].mxu0
          %v947 = vadd.f32 0.0, %v946
          %v948 = vpop.f32.mrb[0].mxu0
          %v949 = vpop.f32.mrb[0].mxu0
          %v950 = vadd.f32 0.0, %v949
          %v951 = vpop.f32.mrb[0].mxu0
          %952 = vmatprep.mubr.bf16.mxu0 0
          %953 = vmatmul.mubr.bf16.gmra.mrb[0].mxu0 %v858
          %v954 = vpop.f32.mrb[0].mxu0
          %v955 = vadd.f32 0.0, %v954
          %v956 = vpop.f32.mrb[0].mxu0
          %v957 = vpop.f32.mrb[0].mxu0
          %v958 = vadd.f32 0.0, %v957
          %v959 = vpop.f32.mrb[0].mxu0
          %960 = vdwg.mxu0
          %v962 = vsel %vm835, %v801, 0
          %v965 = vsel %vm835, %v802, 0
          %v968 = vsel %vm835, %v803, 0
          %v971 = vsel %vm835, %v804, 0
          %v974 = vsel %vm835, %v805, 0
          %v977 = vsel %vm835, %v806, 0
          %v980 = vsel %vm835, %v807, 0
          %v983 = vsel %vm835, %v808, 0
          %v986 = vsel %vm860, %v833, 0
          %988 = vmatprep.subr.bf16.mxu0 0
          %989 = vmatpush1.bf16.msra.mxu0 %v986
          %990 = vmatprep.subr.bf16.mxu0 0
          %991 = vmatpush1.bf16.msra.mxu0 0
          %992 = vmatprep.subr.bf16.mxu0 0
          %993 = vmatpush1.bf16.msra.mxu0 0
          %994 = vmatprep.subr.bf16.mxu0 0
          %995 = vmatpush1.bf16.msra.mxu0 0
          %996 = vmatprep.subr.bf16.mxu0 0
          %997 = vmatpush1.bf16.msra.mxu0 0
          %998 = vmatprep.subr.bf16.mxu0 0
          %999 = vmatpush1.bf16.msra.mxu0 0
          %1000 = vmatprep.subr.bf16.mxu0 0
          %1001 = vmatpush1.bf16.msra.mxu0 0
          %1002 = vmatprep.subr.bf16.mxu0 0
          %1003 = vmatpush1.bf16.msra.mxu0 0
          %1004 = vmatprep.subr.bf16.mxu0 0
          %1005 = vmatpush1.bf16.msra.mxu0 0
          %1006 = vmatprep.subr.bf16.mxu0 0
          %1007 = vmatpush1.bf16.msra.mxu0 0
          %1008 = vmatprep.subr.bf16.mxu0 0
          %1009 = vmatpush1.bf16.msra.mxu0 0
          %1010 = vmatprep.subr.bf16.mxu0 0
          %1011 = vmatpush1.bf16.msra.mxu0 0
          %1012 = vmatprep.subr.bf16.mxu0 0
          %1013 = vmatpush1.bf16.msra.mxu0 0
          %1014 = vmatprep.subr.bf16.mxu0 0
          %1015 = vmatpush1.bf16.msra.mxu0 0
          %1016 = vmatprep.subr.bf16.mxu0 0
          %1017 = vmatpush1.bf16.msra.mxu0 0
          %1018 = vmatprep.subr.bf16.mxu0 0
          %1019 = vmatpush1.bf16.msra.mxu0 0
          %1020 = vmatprep.mubr.bf16.mxu0 0
          %1021 = vmatmul.mubr.bf16.gmra.mrb[0].mxu0 %v962
          %v1022 = vpop.f32.mrb[0].mxu0
          %v1023 = vadd.f32 %v899, %v1022
          %v1024 = vpop.f32.mrb[0].mxu0
          %v1025 = vpop.f32.mrb[0].mxu0
          %v1026 = vadd.f32 %v902, %v1025
          %v1027 = vpop.f32.mrb[0].mxu0
          %1028 = vmatprep.mubr.bf16.mxu0 0
          %1029 = vmatmul.mubr.bf16.gmra.mrb[0].mxu0 %v965
          %v1030 = vpop.f32.mrb[0].mxu0
          %v1031 = vadd.f32 %v907, %v1030
          %v1032 = vpop.f32.mrb[0].mxu0
          %v1033 = vpop.f32.mrb[0].mxu0
          %v1034 = vadd.f32 %v910, %v1033
          %v1035 = vpop.f32.mrb[0].mxu0
          %1036 = vmatprep.mubr.bf16.mxu0 0
          %1037 = vmatmul.mubr.bf16.gmra.mrb[0].mxu0 %v968
          %v1038 = vpop.f32.mrb[0].mxu0
          %v1039 = vadd.f32 %v915, %v1038
          %v1040 = vpop.f32.mrb[0].mxu0
          %v1041 = vpop.f32.mrb[0].mxu0
          %v1042 = vadd.f32 %v918, %v1041
          %v1043 = vpop.f32.mrb[0].mxu0
          %1044 = vmatprep.mubr.bf16.mxu0 0
          %1045 = vmatmul.mubr.bf16.gmra.mrb[0].mxu0 %v971
          %v1046 = vpop.f32.mrb[0].mxu0
          %v1047 = vadd.f32 %v923, %v1046
          %v1048 = vpop.f32.mrb[0].mxu0
          %v1049 = vpop.f32.mrb[0].mxu0
          %v1050 = vadd.f32 %v926, %v1049
          %v1051 = vpop.f32.mrb[0].mxu0
          %1052 = vmatprep.mubr.bf16.mxu0 0
          %1053 = vmatmul.mubr.bf16.gmra.mrb[0].mxu0 %v974
          %v1054 = vpop.f32.mrb[0].mxu0
          %v1055 = vadd.f32 %v931, %v1054
          %v1056 = vpop.f32.mrb[0].mxu0
          %v1057 = vpop.f32.mrb[0].mxu0
          %v1058 = vadd.f32 %v934, %v1057
          %v1059 = vpop.f32.mrb[0].mxu0
          %1060 = vmatprep.mubr.bf16.mxu0 0
          %1061 = vmatmul.mubr.bf16.gmra.mrb[0].mxu0 %v977
          %v1062 = vpop.f32.mrb[0].mxu0
          %v1063 = vadd.f32 %v939, %v1062
          %v1064 = vpop.f32.mrb[0].mxu0
          %v1065 = vpop.f32.mrb[0].mxu0
          %v1066 = vadd.f32 %v942, %v1065
          %v1067 = vpop.f32.mrb[0].mxu0
          %1068 = vmatprep.mubr.bf16.mxu0 0
          %1069 = vmatmul.mubr.bf16.gmra.mrb[0].mxu0 %v980
          %v1070 = vpop.f32.mrb[0].mxu0
          %v1071 = vadd.f32 %v947, %v1070
          %v1072 = vpop.f32.mrb[0].mxu0
          %v1073 = vpop.f32.mrb[0].mxu0
          %v1074 = vadd.f32 %v950, %v1073
          %v1075 = vpop.f32.mrb[0].mxu0
          %1076 = vmatprep.mubr.bf16.mxu0 0
          %1077 = vmatmul.mubr.bf16.gmra.mrb[0].mxu0 %v983
          %v1078 = vpop.f32.mrb[0].mxu0
          %v1079 = vadd.f32 %v955, %v1078
          %v1080 = vpop.f32.mrb[0].mxu0
          %v1081 = vpop.f32.mrb[0].mxu0
          %v1082 = vadd.f32 %v958, %v1081
          %v1083 = vpop.f32.mrb[0].mxu0
          %1084 = vdwg.mxu0
          %v1085 = vld [vmem:[%s634] sm:$0xf]
          %v1086 = vld [vmem:[%s634 + $0x4] sm:$0xf]
          %v1087 = vld [vmem:[%s634 + $0x8] sm:$0xf]
          %v1088 = vld [vmem:[%s634 + $0xc] sm:$0xf]
          %v1089 = vld [vmem:[%s634 + $0x10] sm:$0xf]
          %v1090 = vld [vmem:[%s634 + $0x14] sm:$0xf]
          %v1091 = vld [vmem:[%s634 + $0x18] sm:$0xf]
          %v1092 = vld [vmem:[%s634 + $0x1c] sm:$0xf]
          %v1093 = vld [vmem:[%s634 + $0x20] sm:$0xf]
          %v1094 = vld [vmem:[%s634 + $0x24] sm:$0xf]
          %v1095 = vld [vmem:[%s634 + $0x28] sm:$0xf]
          %v1096 = vld [vmem:[%s634 + $0x2c] sm:$0xf]
          %v1097 = vld [vmem:[%s634 + $0x30] sm:$0xf]
          %v1098 = vld [vmem:[%s634 + $0x34] sm:$0xf]
          %v1099 = vld [vmem:[%s634 + $0x38] sm:$0xf]
          %v1100 = vld [vmem:[%s634 + $0x3c] sm:$0xf]
          %v1101 = vld [vmem:[#allocation21] sm:$0xf]
          %v1118 = vunpack.c.l.b16 %v1085
          %v1119 = vunpack.c.l.b16 %v1086
          %v1120 = vunpack.c.l.b16 %v1087
          %v1121 = vunpack.c.l.b16 %v1088
          %v1122 = vunpack.c.l.b16 %v1089
          %v1123 = vunpack.c.l.b16 %v1090
          %v1124 = vunpack.c.l.b16 %v1091
          %v1125 = vunpack.c.l.b16 %v1092
          %v1126 = vunpack.c.l.b16 %v1093
          %v1127 = vunpack.c.l.b16 %v1094
          %v1128 = vunpack.c.l.b16 %v1095
          %v1129 = vunpack.c.l.b16 %v1096
          %v1130 = vunpack.c.l.b16 %v1097
          %v1131 = vunpack.c.l.b16 %v1098
          %v1132 = vunpack.c.l.b16 %v1099
          %v1133 = vunpack.c.l.b16 %v1100
          %v1134 = vpack.c.b16 %v1119, %v1118
          %v1135 = vpack.c.b16 %v1121, %v1120
          %v1136 = vpack.c.b16 %v1123, %v1122
          %v1137 = vpack.c.b16 %v1125, %v1124
          %v1138 = vpack.c.b16 %v1127, %v1126
          %v1139 = vpack.c.b16 %v1129, %v1128
          %v1140 = vpack.c.b16 %v1131, %v1130
          %v1141 = vpack.c.b16 %v1133, %v1132
          %v1143 = vsel %vm835, %v1134, 0
          %v1146 = vsel %vm835, %v1135, 0
          %v1149 = vsel %vm835, %v1136, 0
          %v1152 = vsel %vm835, %v1137, 0
          %v1155 = vsel %vm835, %v1138, 0
          %v1158 = vsel %vm835, %v1139, 0
          %v1161 = vsel %vm835, %v1140, 0
          %v1164 = vsel %vm835, %v1141, 0
          %v1167 = vsel %vm860, %v1101, 0
          %1169 = vmatprep.subr.bf16.mxu0 0
          %1170 = vmatpush1.bf16.msra.mxu0 %v1167
          %1171 = vmatprep.subr.bf16.mxu0 0
          %1172 = vmatpush1.bf16.msra.mxu0 0
          %1173 = vmatprep.subr.bf16.mxu0 0
          %1174 = vmatpush1.bf16.msra.mxu0 0
          %1175 = vmatprep.subr.bf16.mxu0 0
          %1176 = vmatpush1.bf16.msra.mxu0 0
          %1177 = vmatprep.subr.bf16.mxu0 0
          %1178 = vmatpush1.bf16.msra.mxu0 0
          %1179 = vmatprep.subr.bf16.mxu0 0
          %1180 = vmatpush1.bf16.msra.mxu0 0
          %1181 = vmatprep.subr.bf16.mxu0 0
          %1182 = vmatpush1.bf16.msra.mxu0 0
          %1183 = vmatprep.subr.bf16.mxu0 0
          %1184 = vmatpush1.bf16.msra.mxu0 0
          %1185 = vmatprep.subr.bf16.mxu0 0
          %1186 = vmatpush1.bf16.msra.mxu0 0
          %1187 = vmatprep.subr.bf16.mxu0 0
          %1188 = vmatpush1.bf16.msra.mxu0 0
          %1189 = vmatprep.subr.bf16.mxu0 0
          %1190 = vmatpush1.bf16.msra.mxu0 0
          %1191 = vmatprep.subr.bf16.mxu0 0
          %1192 = vmatpush1.bf16.msra.mxu0 0
          %1193 = vmatprep.subr.bf16.mxu0 0
          %1194 = vmatpush1.bf16.msra.mxu0 0
          %1195 = vmatprep.subr.bf16.mxu0 0
          %1196 = vmatpush1.bf16.msra.mxu0 0
          %1197 = vmatprep.subr.bf16.mxu0 0
          %1198 = vmatpush1.bf16.msra.mxu0 0
          %1199 = vmatprep.subr.bf16.mxu0 0
          %1200 = vmatpush1.bf16.msra.mxu0 0
          %1201 = vmatprep.mubr.bf16.mxu0 0
          %1202 = vmatmul.mubr.bf16.gmra.mrb[0].mxu0 %v1143
          %v1203 = vpop.f32.mrb[0].mxu0
          %v1204 = vadd.f32 0.0, %v1203
          %v1205 = vpop.f32.mrb[0].mxu0
          %v1206 = vpop.f32.mrb[0].mxu0
          %v1207 = vadd.f32 0.0, %v1206
          %v1208 = vpop.f32.mrb[0].mxu0
          %1209 = vmatprep.mubr.bf16.mxu0 0
          %1210 = vmatmul.mubr.bf16.gmra.mrb[0].mxu0 %v1146
          %v1211 = vpop.f32.mrb[0].mxu0
          %v1212 = vadd.f32 0.0, %v1211
          %v1213 = vpop.f32.mrb[0].mxu0
          %v1214 = vpop.f32.mrb[0].mxu0
          %v1215 = vadd.f32 0.0, %v1214
          %v1216 = vpop.f32.mrb[0].mxu0
          %1217 = vmatprep.mubr.bf16.mxu0 0
          %1218 = vmatmul.mubr.bf16.gmra.mrb[0].mxu0 %v1149
          %v1219 = vpop.f32.mrb[0].mxu0
          %v1220 = vadd.f32 0.0, %v1219
          %v1221 = vpop.f32.mrb[0].mxu0
          %v1222 = vpop.f32.mrb[0].mxu0
          %v1223 = vadd.f32 0.0, %v1222
          %v1224 = vpop.f32.mrb[0].mxu0
          %1225 = vmatprep.mubr.bf16.mxu0 0
          %1226 = vmatmul.mubr.bf16.gmra.mrb[0].mxu0 %v1152
          %v1227 = vpop.f32.mrb[0].mxu0
          %v1228 = vadd.f32 0.0, %v1227
          %v1229 = vpop.f32.mrb[0].mxu0
          %v1230 = vpop.f32.mrb[0].mxu0
          %v1231 = vadd.f32 0.0, %v1230
          %v1232 = vpop.f32.mrb[0].mxu0
          %1233 = vmatprep.mubr.bf16.mxu0 0
          %1234 = vmatmul.mubr.bf16.gmra.mrb[0].mxu0 %v1155
          %v1235 = vpop.f32.mrb[0].mxu0
          %v1236 = vadd.f32 0.0, %v1235
          %v1237 = vpop.f32.mrb[0].mxu0
          %v1238 = vpop.f32.mrb[0].mxu0
          %v1239 = vadd.f32 0.0, %v1238
          %v1240 = vpop.f32.mrb[0].mxu0
          %1241 = vmatprep.mubr.bf16.mxu0 0
          %1242 = vmatmul.mubr.bf16.gmra.mrb[0].mxu0 %v1158
          %v1243 = vpop.f32.mrb[0].mxu0
          %v1244 = vadd.f32 0.0, %v1243
          %v1245 = vpop.f32.mrb[0].mxu0
          %v1246 = vpop.f32.mrb[0].mxu0
          %v1247 = vadd.f32 0.0, %v1246
          %v1248 = vpop.f32.mrb[0].mxu0
          %1249 = vmatprep.mubr.bf16.mxu0 0
          %1250 = vmatmul.mubr.bf16.gmra.mrb[0].mxu0 %v1161
          %v1251 = vpop.f32.mrb[0].mxu0
          %v1252 = vadd.f32 0.0, %v1251
          %v1253 = vpop.f32.mrb[0].mxu0
          %v1254 = vpop.f32.mrb[0].mxu0
          %v1255 = vadd.f32 0.0, %v1254
          %v1256 = vpop.f32.mrb[0].mxu0
          %1257 = vmatprep.mubr.bf16.mxu0 0
          %1258 = vmatmul.mubr.bf16.gmra.mrb[0].mxu0 %v1164
          %v1259 = vpop.f32.mrb[0].mxu0
          %v1260 = vadd.f32 0.0, %v1259
          %v1261 = vpop.f32.mrb[0].mxu0
          %v1262 = vpop.f32.mrb[0].mxu0
          %v1263 = vadd.f32 0.0, %v1262
          %v1264 = vpop.f32.mrb[0].mxu0
          %1265 = vdwg.mxu0
          %v1266 = vpack.c.bf16 %v1026, %v1023
          %v1267 = vpack.c.bf16 %v1034, %v1031
          %v1268 = vpack.c.bf16 %v1042, %v1039
          %v1269 = vpack.c.bf16 %v1050, %v1047
          %v1270 = vpack.c.bf16 %v1058, %v1055
          %v1271 = vpack.c.bf16 %v1066, %v1063
          %v1272 = vpack.c.bf16 %v1074, %v1071
          %v1273 = vpack.c.bf16 %v1082, %v1079
          %1274 = vst.msk [vmem:[#allocation2] sm:$0xff] %vm835, %v1266
          %1275 = vst.msk [vmem:[#allocation2 + $0x8] sm:$0xff] %vm835, %v1267
          %1276 = vst.msk [vmem:[#allocation2 + $0x10] sm:$0xff] %vm835, %v1268
          %1277 = vst.msk [vmem:[#allocation2 + $0x18] sm:$0xff] %vm835, %v1269
          %1278 = vst.msk [vmem:[#allocation2 + $0x20] sm:$0xff] %vm835, %v1270
          %1279 = vst.msk [vmem:[#allocation2 + $0x28] sm:$0xff] %vm835, %v1271
          %1280 = vst.msk [vmem:[#allocation2 + $0x30] sm:$0xff] %vm835, %v1272
          %1281 = vst.msk [vmem:[#allocation2 + $0x38] sm:$0xff] %vm835, %v1273
          %v1282 = vpack.c.bf16 %v1207, %v1204
          %v1283 = vpack.c.bf16 %v1215, %v1212
          %v1284 = vpack.c.bf16 %v1223, %v1220
          %v1285 = vpack.c.bf16 %v1231, %v1228
          %v1286 = vpack.c.bf16 %v1239, %v1236
          %v1287 = vpack.c.bf16 %v1247, %v1244
          %v1288 = vpack.c.bf16 %v1255, %v1252
          %v1289 = vpack.c.bf16 %v1263, %v1260
          %1290 = vst.msk [vmem:[#allocation3] sm:$0xff] %vm835, %v1282
          %1291 = vst.msk [vmem:[#allocation3 + $0x8] sm:$0xff] %vm835, %v1283
          %1292 = vst.msk [vmem:[#allocation3 + $0x10] sm:$0xff] %vm835, %v1284
          %1293 = vst.msk [vmem:[#allocation3 + $0x18] sm:$0xff] %vm835, %v1285
          %1294 = vst.msk [vmem:[#allocation3 + $0x20] sm:$0xff] %vm835, %v1286
          %1295 = vst.msk [vmem:[#allocation3 + $0x28] sm:$0xff] %vm835, %v1287
          %1296 = vst.msk [vmem:[#allocation3 + $0x30] sm:$0xff] %vm835, %v1288
          %1297 = vst.msk [vmem:[#allocation3 + $0x38] sm:$0xff] %vm835, %v1289
        $region128: #{tpu_custom_call.1} parent=71 // pred_fallthru
          _
        %s1298 = smul.u32 %s45, 16
        %s1299 = scalar_lea.vmem [#allocation12], %s1298
        %v1300 = vld [vmem:[%s1299] sm:$0xff]
        %v1301 = vld [vmem:[%s1299 + $0x8] sm:$0xff]
        %s1302 = scalar_lea.vmem [#allocation13], %s1298
        %v1303 = vld [vmem:[%s1302] sm:$0xff]
        %v1304 = vld [vmem:[%s1302 + $0x8] sm:$0xff]
        %v1305 = vld [vmem:[%s616] sm:$0xf]
        %v1306 = vld [vmem:[%s616 + $0x4] sm:$0xf]
        %v1307 = vld [vmem:[%s616 + $0x8] sm:$0xf]
        %v1308 = vld [vmem:[%s616 + $0xc] sm:$0xf]
        %v1309 = vld [vmem:[%s616 + $0x10] sm:$0xf]
        %v1310 = vld [vmem:[%s616 + $0x14] sm:$0xf]
        %v1311 = vld [vmem:[%s616 + $0x18] sm:$0xf]
        %v1312 = vld [vmem:[%s616 + $0x1c] sm:$0xf]
        %v1313 = vunpack.c.l.bf16 %v1305
        %v1314 = vunpack.c.l.bf16 %v1306
        %v1315 = vunpack.c.l.bf16 %v1307
        %v1316 = vunpack.c.l.bf16 %v1308
        %v1317 = vunpack.c.l.bf16 %v1309
        %v1318 = vunpack.c.l.bf16 %v1310
        %v1319 = vunpack.c.l.bf16 %v1311
        %v1320 = vunpack.c.l.bf16 %v1312
        %v1321 = vmul.f32 %v1313, %v1300
        %v1322 = vmul.f32 %v1314, %v1301
        %v1323 = vmul.f32 %v1315, %v1300
        %v1324 = vmul.f32 %v1316, %v1301
        %v1325 = vmul.f32 %v1317, %v1300
        %v1326 = vmul.f32 %v1318, %v1301
        %v1327 = vmul.f32 %v1319, %v1300
        %v1328 = vmul.f32 %v1320, %v1301
        %v1329 = vpack.c.bf16 %v1322, %v1321
        %v1330 = vpack.c.bf16 %v1324, %v1323
        %v1331 = vpack.c.bf16 %v1326, %v1325
        %v1332 = vpack.c.bf16 %v1328, %v1327
        %v1333 = vmul.f32 %v1313, %v1303
        %v1334 = vmul.f32 %v1314, %v1304
        %v1335 = vmul.f32 %v1315, %v1303
        %v1336 = vmul.f32 %v1316, %v1304
        %v1337 = vmul.f32 %v1317, %v1303
        %v1338 = vmul.f32 %v1318, %v1304
        %v1339 = vmul.f32 %v1319, %v1303
        %v1340 = vmul.f32 %v1320, %v1304
        %v1341 = vpack.c.bf16 %v1334, %v1333
        %v1342 = vpack.c.bf16 %v1336, %v1335
        %v1343 = vpack.c.bf16 %v1338, %v1337
        %v1344 = vpack.c.bf16 %v1340, %v1339
        %v1345 = vld [vmem:[#allocation15] sm:$0xf]
        %v1346 = vld [vmem:[#allocation16] sm:$0xf]
        %vm1347 = vcmask 64512
        %v1349 = vsel %vm1347, %v1341, 0
        %v1352 = vsel %vm1347, %v1342, 0
        %v1355 = vsel %vm1347, %v1343, 0
        %v1358 = vsel %vm1347, %v1344, 0
        %vm1360 = vcmask 1043456
        %v1362 = vsel %vm1360, %v1346, 0
        %1364 = vmatprep.subr.bf16.mxu0 0
        %1365 = vmatpush1.bf16.msra.mxu0 %v1362
        %1366 = vmatprep.subr.bf16.mxu0 0
        %1367 = vmatpush1.bf16.msra.mxu0 0
        %1368 = vmatprep.subr.bf16.mxu0 0
        %1369 = vmatpush1.bf16.msra.mxu0 0
        %1370 = vmatprep.subr.bf16.mxu0 0
        %1371 = vmatpush1.bf16.msra.mxu0 0
        %1372 = vmatprep.subr.bf16.mxu0 0
        %1373 = vmatpush1.bf16.msra.mxu0 0
        %1374 = vmatprep.subr.bf16.mxu0 0
        %1375 = vmatpush1.bf16.msra.mxu0 0
        %1376 = vmatprep.subr.bf16.mxu0 0
        %1377 = vmatpush1.bf16.msra.mxu0 0
        %1378 = vmatprep.subr.bf16.mxu0 0
        %1379 = vmatpush1.bf16.msra.mxu0 0
        %1380 = vmatprep.subr.bf16.mxu0 0
        %1381 = vmatpush1.bf16.msra.mxu0 0
        %1382 = vmatprep.subr.bf16.mxu0 0
        %1383 = vmatpush1.bf16.msra.mxu0 0
        %1384 = vmatprep.subr.bf16.mxu0 0
        %1385 = vmatpush1.bf16.msra.mxu0 0
        %1386 = vmatprep.subr.bf16.mxu0 0
        %1387 = vmatpush1.bf16.msra.mxu0 0
        %1388 = vmatprep.subr.bf16.mxu0 0
        %1389 = vmatpush1.bf16.msra.mxu0 0
        %1390 = vmatprep.subr.bf16.mxu0 0
        %1391 = vmatpush1.bf16.msra.mxu0 0
        %1392 = vmatprep.subr.bf16.mxu0 0
        %1393 = vmatpush1.bf16.msra.mxu0 0
        %1394 = vmatprep.subr.bf16.mxu0 0
        %1395 = vmatpush1.bf16.msra.mxu0 0
        %1396 = vmatprep.mubr.bf16.mxu0 0
        %1397 = vmatmul.mubr.bf16.gmra.mrb[0].mxu0 %v1349
        %v1398 = vpop.f32.mrb[0].mxu0
        %v1399 = vadd.f32 0.0, %v1398
        %v1400 = vpop.f32.mrb[0].mxu0
        %v1401 = vpop.f32.mrb[0].mxu0
        %v1402 = vadd.f32 0.0, %v1401
        %v1403 = vpop.f32.mrb[0].mxu0
        %1404 = vmatprep.mubr.bf16.mxu0 0
        %1405 = vmatmul.mubr.bf16.gmra.mrb[0].mxu0 %v1352
        %v1406 = vpop.f32.mrb[0].mxu0
        %v1407 = vadd.f32 0.0, %v1406
        %v1408 = vpop.f32.mrb[0].mxu0
        %v1409 = vpop.f32.mrb[0].mxu0
        %v1410 = vadd.f32 0.0, %v1409
        %v1411 = vpop.f32.mrb[0].mxu0
        %1412 = vmatprep.mubr.bf16.mxu0 0
        %1413 = vmatmul.mubr.bf16.gmra.mrb[0].mxu0 %v1355
        %v1414 = vpop.f32.mrb[0].mxu0
        %v1415 = vadd.f32 0.0, %v1414
        %v1416 = vpop.f32.mrb[0].mxu0
        %v1417 = vpop.f32.mrb[0].mxu0
        %v1418 = vadd.f32 0.0, %v1417
        %v1419 = vpop.f32.mrb[0].mxu0
        %1420 = vmatprep.mubr.bf16.mxu0 0
        %1421 = vmatmul.mubr.bf16.gmra.mrb[0].mxu0 %v1358
        %v1422 = vpop.f32.mrb[0].mxu0
        %v1423 = vadd.f32 0.0, %v1422
        %v1424 = vpop.f32.mrb[0].mxu0
        %v1425 = vpop.f32.mrb[0].mxu0
        %v1426 = vadd.f32 0.0, %v1425
        %v1427 = vpop.f32.mrb[0].mxu0
        %1428 = vdwg.mxu0
        %v1430 = vsel %vm1347, %v1329, 0
        %v1433 = vsel %vm1347, %v1330, 0
        %v1436 = vsel %vm1347, %v1331, 0
        %v1439 = vsel %vm1347, %v1332, 0
        %v1442 = vsel %vm1360, %v1345, 0
        %1444 = vmatprep.subr.bf16.mxu0 0
        %1445 = vmatpush1.bf16.msra.mxu0 %v1442
        %1446 = vmatprep.subr.bf16.mxu0 0
        %1447 = vmatpush1.bf16.msra.mxu0 0
        %1448 = vmatprep.subr.bf16.mxu0 0
        %1449 = vmatpush1.bf16.msra.mxu0 0
        %1450 = vmatprep.subr.bf16.mxu0 0
        %1451 = vmatpush1.bf16.msra.mxu0 0
        %1452 = vmatprep.subr.bf16.mxu0 0
        %1453 = vmatpush1.bf16.msra.mxu0 0
        %1454 = vmatprep.subr.bf16.mxu0 0
        %1455 = vmatpush1.bf16.msra.mxu0 0
        %1456 = vmatprep.subr.bf16.mxu0 0
        %1457 = vmatpush1.bf16.msra.mxu0 0
        %1458 = vmatprep.subr.bf16.mxu0 0
        %1459 = vmatpush1.bf16.msra.mxu0 0
        %1460 = vmatprep.subr.bf16.mxu0 0
        %1461 = vmatpush1.bf16.msra.mxu0 0
        %1462 = vmatprep.subr.bf16.mxu0 0
        %1463 = vmatpush1.bf16.msra.mxu0 0
        %1464 = vmatprep.subr.bf16.mxu0 0
        %1465 = vmatpush1.bf16.msra.mxu0 0
        %1466 = vmatprep.subr.bf16.mxu0 0
        %1467 = vmatpush1.bf16.msra.mxu0 0
        %1468 = vmatprep.subr.bf16.mxu0 0
        %1469 = vmatpush1.bf16.msra.mxu0 0
        %1470 = vmatprep.subr.bf16.mxu0 0
        %1471 = vmatpush1.bf16.msra.mxu0 0
        %1472 = vmatprep.subr.bf16.mxu0 0
        %1473 = vmatpush1.bf16.msra.mxu0 0
        %1474 = vmatprep.subr.bf16.mxu0 0
        %1475 = vmatpush1.bf16.msra.mxu0 0
        %1476 = vmatprep.mubr.bf16.mxu0 0
        %1477 = vmatmul.mubr.bf16.gmra.mrb[0].mxu0 %v1430
        %v1478 = vpop.f32.mrb[0].mxu0
        %v1479 = vadd.f32 %v1399, %v1478
        %v1480 = vpop.f32.mrb[0].mxu0
        %v1481 = vpop.f32.mrb[0].mxu0
        %v1482 = vadd.f32 %v1402, %v1481
        %v1483 = vpop.f32.mrb[0].mxu0
        %1484 = vmatprep.mubr.bf16.mxu0 0
        %1485 = vmatmul.mubr.bf16.gmra.mrb[0].mxu0 %v1433
        %v1486 = vpop.f32.mrb[0].mxu0
        %v1487 = vadd.f32 %v1407, %v1486
        %v1488 = vpop.f32.mrb[0].mxu0
        %v1489 = vpop.f32.mrb[0].mxu0
        %v1490 = vadd.f32 %v1410, %v1489
        %v1491 = vpop.f32.mrb[0].mxu0
        %1492 = vmatprep.mubr.bf16.mxu0 0
        %1493 = vmatmul.mubr.bf16.gmra.mrb[0].mxu0 %v1436
        %v1494 = vpop.f32.mrb[0].mxu0
        %v1495 = vadd.f32 %v1415, %v1494
        %v1496 = vpop.f32.mrb[0].mxu0
        %v1497 = vpop.f32.mrb[0].mxu0
        %v1498 = vadd.f32 %v1418, %v1497
        %v1499 = vpop.f32.mrb[0].mxu0
        %1500 = vmatprep.mubr.bf16.mxu0 0
        %1501 = vmatmul.mubr.bf16.gmra.mrb[0].mxu0 %v1439
        %v1502 = vpop.f32.mrb[0].mxu0
        %v1503 = vadd.f32 %v1423, %v1502
        %v1504 = vpop.f32.mrb[0].mxu0
        %v1505 = vpop.f32.mrb[0].mxu0
        %v1506 = vadd.f32 %v1426, %v1505
        %v1507 = vpop.f32.mrb[0].mxu0
        %1508 = vdwg.mxu0
        %v1509 = vpack.c.bf16 %v1482, %v1479
        %v1510 = vpack.c.bf16 %v1490, %v1487
        %v1511 = vpack.c.bf16 %v1498, %v1495
        %v1512 = vpack.c.bf16 %v1506, %v1503
        %v1513 = vld [vmem:[#allocation2] sm:$0xff]
        %v1514 = vld [vmem:[#allocation2 + $0x8] sm:$0xff]
        %v1515 = vld [vmem:[#allocation2 + $0x10] sm:$0xff]
        %v1516 = vld [vmem:[#allocation2 + $0x18] sm:$0xff]
        %v1517 = vld [vmem:[#allocation2 + $0x20] sm:$0xff]
        %v1518 = vld [vmem:[#allocation2 + $0x28] sm:$0xff]
        %v1519 = vld [vmem:[#allocation2 + $0x30] sm:$0xff]
        %v1520 = vld [vmem:[#allocation2 + $0x38] sm:$0xff]
        %v1521 = vld [vmem:[#allocation3] sm:$0xff]
        %v1522 = vld [vmem:[#allocation3 + $0x8] sm:$0xff]
        %v1523 = vld [vmem:[#allocation3 + $0x10] sm:$0xff]
        %v1524 = vld [vmem:[#allocation3 + $0x18] sm:$0xff]
        %v1525 = vld [vmem:[#allocation3 + $0x20] sm:$0xff]
        %v1526 = vld [vmem:[#allocation3 + $0x28] sm:$0xff]
        %v1527 = vld [vmem:[#allocation3 + $0x30] sm:$0xff]
        %v1528 = vld [vmem:[#allocation3 + $0x38] sm:$0xff]
        %v1529 = vld [vmem:[%s643] sm:$0xf]
        %v1530 = vld [vmem:[%s643 + $0x4] sm:$0xf]
        %v1531 = vunpack.c.l.bf16 %v1529
        %v1532 = vunpack.c.l.bf16 %v1530
        %v1534 = vsel %vm1347, %v1509, 0
        %v1537 = vsel %vm1347, %v1513, 0
        %v1540 = vsel %vm1347, %v1514, 0
        %1542 = vmatprep.subr.bf16.mxu0 0
        %1543 = vmatpush1.bf16.xpose.msra.mxu0 %v1537
        %1544 = vmatprep.subr.bf16.mxu0 0
        %1545 = vmatpush1.bf16.xpose.msra.mxu0 %v1540
        %1546 = vmatprep.subr.bf16.mxu0 0
        %1547 = vmatpush1.bf16.xpose.msra.mxu0 0
        %1548 = vmatprep.subr.bf16.mxu0 0
        %1549 = vmatpush1.bf16.xpose.msra.mxu0 0
        %1550 = vmatprep.subr.bf16.mxu0 0
        %1551 = vmatpush1.bf16.xpose.msra.mxu0 0
        %1552 = vmatprep.subr.bf16.mxu0 0
        %1553 = vmatpush1.bf16.xpose.msra.mxu0 0
        %1554 = vmatprep.subr.bf16.mxu0 0
        %1555 = vmatpush1.bf16.xpose.msra.mxu0 0
        %1556 = vmatprep.subr.bf16.mxu0 0
        %1557 = vmatpush1.bf16.xpose.msra.mxu0 0
        %1558 = vmatprep.subr.bf16.mxu0 0
        %1559 = vmatpush1.bf16.xpose.msra.mxu0 0
        %1560 = vmatprep.subr.bf16.mxu0 0
        %1561 = vmatpush1.bf16.xpose.msra.mxu0 0
        %1562 = vmatprep.subr.bf16.mxu0 0
        %1563 = vmatpush1.bf16.xpose.msra.mxu0 0
        %1564 = vmatprep.subr.bf16.mxu0 0
        %1565 = vmatpush1.bf16.xpose.msra.mxu0 0
        %1566 = vmatprep.subr.bf16.mxu0 0
        %1567 = vmatpush1.bf16.xpose.msra.mxu0 0
        %1568 = vmatprep.subr.bf16.mxu0 0
        %1569 = vmatpush1.bf16.xpose.msra.mxu0 0
        %1570 = vmatprep.subr.bf16.mxu0 0
        %1571 = vmatpush1.bf16.xpose.msra.mxu0 0
        %1572 = vmatprep.subr.bf16.mxu0 0
        %1573 = vmatpush1.bf16.xpose.msra.mxu0 0
        %1574 = vmatprep.mubr.bf16.mxu0 0
        %1575 = vmatmul.mubr.bf16.gmra.mrb[0].mxu0 %v1534
        %v1576 = vpop.f32.mrb[0].mxu0
        %v1577 = vadd.f32 %v1531, %v1576
        %v1578 = vpop.f32.mrb[0].mxu0
        %v1579 = vpop.f32.mrb[0].mxu0
        %v1580 = vadd.f32 %v1532, %v1579
        %v1581 = vpop.f32.mrb[0].mxu0
        %1582 = vdwg.mxu0
        %v1584 = vsel %vm1347, %v1510, 0
        %v1587 = vsel %vm1347, %v1515, 0
        %v1590 = vsel %vm1347, %v1516, 0
        %1592 = vmatprep.subr.bf16.mxu0 0
        %1593 = vmatpush1.bf16.xpose.msra.mxu0 %v1587
        %1594 = vmatprep.subr.bf16.mxu0 0
        %1595 = vmatpush1.bf16.xpose.msra.mxu0 %v1590
        %1596 = vmatprep.subr.bf16.mxu0 0
        %1597 = vmatpush1.bf16.xpose.msra.mxu0 0
        %1598 = vmatprep.subr.bf16.mxu0 0
        %1599 = vmatpush1.bf16.xpose.msra.mxu0 0
        %1600 = vmatprep.subr.bf16.mxu0 0
        %1601 = vmatpush1.bf16.xpose.msra.mxu0 0
        %1602 = vmatprep.subr.bf16.mxu0 0
        %1603 = vmatpush1.bf16.xpose.msra.mxu0 0
        %1604 = vmatprep.subr.bf16.mxu0 0
        %1605 = vmatpush1.bf16.xpose.msra.mxu0 0
        %1606 = vmatprep.subr.bf16.mxu0 0
        %1607 = vmatpush1.bf16.xpose.msra.mxu0 0
        %1608 = vmatprep.subr.bf16.mxu0 0
        %1609 = vmatpush1.bf16.xpose.msra.mxu0 0
        %1610 = vmatprep.subr.bf16.mxu0 0
        %1611 = vmatpush1.bf16.xpose.msra.mxu0 0
        %1612 = vmatprep.subr.bf16.mxu0 0
        %1613 = vmatpush1.bf16.xpose.msra.mxu0 0
        %1614 = vmatprep.subr.bf16.mxu0 0
        %1615 = vmatpush1.bf16.xpose.msra.mxu0 0
        %1616 = vmatprep.subr.bf16.mxu0 0
        %1617 = vmatpush1.bf16.xpose.msra.mxu0 0
        %1618 = vmatprep.subr.bf16.mxu0 0
        %1619 = vmatpush1.bf16.xpose.msra.mxu0 0
        %1620 = vmatprep.subr.bf16.mxu0 0
        %1621 = vmatpush1.bf16.xpose.msra.mxu0 0
        %1622 = vmatprep.subr.bf16.mxu0 0
        %1623 = vmatpush1.bf16.xpose.msra.mxu0 0
        %1624 = vmatprep.mubr.bf16.mxu0 0
        %1625 = vmatmul.mubr.bf16.gmra.mrb[0].mxu0 %v1584
        %v1626 = vpop.f32.mrb[0].mxu0
        %v1627 = vadd.f32 %v1531, %v1626
        %v1628 = vpop.f32.mrb[0].mxu0
        %v1629 = vpop.f32.mrb[0].mxu0
        %v1630 = vadd.f32 %v1532, %v1629
        %v1631 = vpop.f32.mrb[0].mxu0
        %1632 = vdwg.mxu0
        %v1634 = vsel %vm1347, %v1511, 0
        %v1637 = vsel %vm1347, %v1517, 0
        %v1640 = vsel %vm1347, %v1518, 0
        %1642 = vmatprep.subr.bf16.mxu0 0
        %1643 = vmatpush1.bf16.xpose.msra.mxu0 %v1637
        %1644 = vmatprep.subr.bf16.mxu0 0
        %1645 = vmatpush1.bf16.xpose.msra.mxu0 %v1640
        %1646 = vmatprep.subr.bf16.mxu0 0
        %1647 = vmatpush1.bf16.xpose.msra.mxu0 0
        %1648 = vmatprep.subr.bf16.mxu0 0
        %1649 = vmatpush1.bf16.xpose.msra.mxu0 0
        %1650 = vmatprep.subr.bf16.mxu0 0
        %1651 = vmatpush1.bf16.xpose.msra.mxu0 0
        %1652 = vmatprep.subr.bf16.mxu0 0
        %1653 = vmatpush1.bf16.xpose.msra.mxu0 0
        %1654 = vmatprep.subr.bf16.mxu0 0
        %1655 = vmatpush1.bf16.xpose.msra.mxu0 0
        %1656 = vmatprep.subr.bf16.mxu0 0
        %1657 = vmatpush1.bf16.xpose.msra.mxu0 0
        %1658 = vmatprep.subr.bf16.mxu0 0
        %1659 = vmatpush1.bf16.xpose.msra.mxu0 0
        %1660 = vmatprep.subr.bf16.mxu0 0
        %1661 = vmatpush1.bf16.xpose.msra.mxu0 0
        %1662 = vmatprep.subr.bf16.mxu0 0
        %1663 = vmatpush1.bf16.xpose.msra.mxu0 0
        %1664 = vmatprep.subr.bf16.mxu0 0
        %1665 = vmatpush1.bf16.xpose.msra.mxu0 0
        %1666 = vmatprep.subr.bf16.mxu0 0
        %1667 = vmatpush1.bf16.xpose.msra.mxu0 0
        %1668 = vmatprep.subr.bf16.mxu0 0
        %1669 = vmatpush1.bf16.xpose.msra.mxu0 0
        %1670 = vmatprep.subr.bf16.mxu0 0
        %1671 = vmatpush1.bf16.xpose.msra.mxu0 0
        %1672 = vmatprep.subr.bf16.mxu0 0
        %1673 = vmatpush1.bf16.xpose.msra.mxu0 0
        %1674 = vmatprep.mubr.bf16.mxu0 0
        %1675 = vmatmul.mubr.bf16.gmra.mrb[0].mxu0 %v1634
        %v1676 = vpop.f32.mrb[0].mxu0
        %v1677 = vadd.f32 %v1531, %v1676
        %v1678 = vpop.f32.mrb[0].mxu0
        %v1679 = vpop.f32.mrb[0].mxu0
        %v1680 = vadd.f32 %v1532, %v1679
        %v1681 = vpop.f32.mrb[0].mxu0
        %1682 = vdwg.mxu0
        %v1684 = vsel %vm1347, %v1512, 0
        %v1687 = vsel %vm1347, %v1519, 0
        %v1690 = vsel %vm1347, %v1520, 0
        %1692 = vmatprep.subr.bf16.mxu0 0
        %1693 = vmatpush1.bf16.xpose.msra.mxu0 %v1687
        %1694 = vmatprep.subr.bf16.mxu0 0
        %1695 = vmatpush1.bf16.xpose.msra.mxu0 %v1690
        %1696 = vmatprep.subr.bf16.mxu0 0
        %1697 = vmatpush1.bf16.xpose.msra.mxu0 0
        %1698 = vmatprep.subr.bf16.mxu0 0
        %1699 = vmatpush1.bf16.xpose.msra.mxu0 0
        %1700 = vmatprep.subr.bf16.mxu0 0
        %1701 = vmatpush1.bf16.xpose.msra.mxu0 0
        %1702 = vmatprep.subr.bf16.mxu0 0
        %1703 = vmatpush1.bf16.xpose.msra.mxu0 0
        %1704 = vmatprep.subr.bf16.mxu0 0
        %1705 = vmatpush1.bf16.xpose.msra.mxu0 0
        %1706 = vmatprep.subr.bf16.mxu0 0
        %1707 = vmatpush1.bf16.xpose.msra.mxu0 0
        %1708 = vmatprep.subr.bf16.mxu0 0
        %1709 = vmatpush1.bf16.xpose.msra.mxu0 0
        %1710 = vmatprep.subr.bf16.mxu0 0
        %1711 = vmatpush1.bf16.xpose.msra.mxu0 0
        %1712 = vmatprep.subr.bf16.mxu0 0
        %1713 = vmatpush1.bf16.xpose.msra.mxu0 0
        %1714 = vmatprep.subr.bf16.mxu0 0
        %1715 = vmatpush1.bf16.xpose.msra.mxu0 0
        %1716 = vmatprep.subr.bf16.mxu0 0
        %1717 = vmatpush1.bf16.xpose.msra.mxu0 0
        %1718 = vmatprep.subr.bf16.mxu0 0
        %1719 = vmatpush1.bf16.xpose.msra.mxu0 0
        %1720 = vmatprep.subr.bf16.mxu0 0
        %1721 = vmatpush1.bf16.xpose.msra.mxu0 0
        %1722 = vmatprep.subr.bf16.mxu0 0
        %1723 = vmatpush1.bf16.xpose.msra.mxu0 0
        %1724 = vmatprep.mubr.bf16.mxu0 0
        %1725 = vmatmul.mubr.bf16.gmra.mrb[0].mxu0 %v1684
        %v1726 = vpop.f32.mrb[0].mxu0
        %v1727 = vadd.f32 %v1531, %v1726
        %v1728 = vpop.f32.mrb[0].mxu0
        %v1729 = vpop.f32.mrb[0].mxu0
        %v1730 = vadd.f32 %v1532, %v1729
        %v1731 = vpop.f32.mrb[0].mxu0
        %1732 = vdwg.mxu0
        %v1733 = vmul.f32 %v1577, 0.17677669
        %v1734 = vmul.f32 %v1580, 0.17677669
        %v1735 = vmul.f32 %v1627, 0.17677669
        %v1736 = vmul.f32 %v1630, 0.17677669
        %v1737 = vmul.f32 %v1677, 0.17677669
        %v1738 = vmul.f32 %v1680, 0.17677669
        %v1739 = vmul.f32 %v1727, 0.17677669
        %v1740 = vmul.f32 %v1730, 0.17677669
        %vm1741 = vcmask 261120
        %v1742 = vsel %vm1741, %v1733, -inf
        %1743 = vmax.xlane.f32.xlu0 %v1742
        %v1744 = vpop.xlane.xlu0 %1743
        %v1745 = vsel %vm1741, %v1734, -inf
        %1746 = vmax.xlane.f32.xlu0 %v1745
        %v1747 = vpop.xlane.xlu0 %1746
        %v1748 = vsel %vm1741, %v1735, -inf
        %1749 = vmax.xlane.f32.xlu0 %v1748
        %v1750 = vpop.xlane.xlu0 %1749
        %v1751 = vsel %vm1741, %v1736, -inf
        %1752 = vmax.xlane.f32.xlu0 %v1751
        %v1753 = vpop.xlane.xlu0 %1752
        %v1754 = vsel %vm1741, %v1737, -inf
        %1755 = vmax.xlane.f32.xlu0 %v1754
        %v1756 = vpop.xlane.xlu0 %1755
        %v1757 = vsel %vm1741, %v1738, -inf
        %1758 = vmax.xlane.f32.xlu0 %v1757
        %v1759 = vpop.xlane.xlu0 %1758
        %v1760 = vsel %vm1741, %v1739, -inf
        %1761 = vmax.xlane.f32.xlu0 %v1760
        %v1762 = vpop.xlane.xlu0 %1761
        %v1763 = vsel %vm1741, %v1740, -inf
        %1764 = vmax.xlane.f32.xlu0 %v1763
        %v1765 = vpop.xlane.xlu0 %1764
        %v1766 = vsub.f32 %v1733, %v1744
        %v1767 = vsub.f32 %v1734, %v1747
        %v1768 = vsub.f32 %v1735, %v1750
        %v1769 = vsub.f32 %v1736, %v1753
        %v1770 = vsub.f32 %v1737, %v1756
        %v1771 = vsub.f32 %v1738, %v1759
        %v1772 = vsub.f32 %v1739, %v1762
        %v1773 = vsub.f32 %v1740, %v1765
        %v1774 = vmul.f32 %v1766, 1.442695
        %v1775 = vpow.pop %v1774
        %v1776 = vmul.f32 %v1767, 1.442695
        %v1777 = vpow.pop %v1776
        %v1778 = vmul.f32 %v1768, 1.442695
        %v1779 = vpow.pop %v1778
        %v1780 = vmul.f32 %v1769, 1.442695
        %v1781 = vpow.pop %v1780
        %v1782 = vmul.f32 %v1770, 1.442695
        %v1783 = vpow.pop %v1782
        %v1784 = vmul.f32 %v1771, 1.442695
        %v1785 = vpow.pop %v1784
        %v1786 = vmul.f32 %v1772, 1.442695
        %v1787 = vpow.pop %v1786
        %v1788 = vmul.f32 %v1773, 1.442695
        %v1789 = vpow.pop %v1788
        %v1790 = vsel %vm1741, %v1775, 0.0
        %1791 = vadd.xlane.f32.xlu0 %v1790
        %v1792 = vpop.xlane.xlu0 %1791
        %v1793 = vsel %vm1741, %v1777, 0.0
        %1794 = vadd.xlane.f32.xlu0 %v1793
        %v1795 = vpop.xlane.xlu0 %1794
        %v1796 = vsel %vm1741, %v1779, 0.0
        %1797 = vadd.xlane.f32.xlu0 %v1796
        %v1798 = vpop.xlane.xlu0 %1797
        %v1799 = vsel %vm1741, %v1781, 0.0
        %1800 = vadd.xlane.f32.xlu0 %v1799
        %v1801 = vpop.xlane.xlu0 %1800
        %v1802 = vsel %vm1741, %v1783, 0.0
        %1803 = vadd.xlane.f32.xlu0 %v1802
        %v1804 = vpop.xlane.xlu0 %1803
        %v1805 = vsel %vm1741, %v1785, 0.0
        %1806 = vadd.xlane.f32.xlu0 %v1805
        %v1807 = vpop.xlane.xlu0 %1806
        %v1808 = vsel %vm1741, %v1787, 0.0
        %1809 = vadd.xlane.f32.xlu0 %v1808
        %v1810 = vpop.xlane.xlu0 %1809
        %v1811 = vsel %vm1741, %v1789, 0.0
        %1812 = vadd.xlane.f32.xlu0 %v1811
        %v1813 = vpop.xlane.xlu0 %1812
        %v1814 = vrcp.pop %v1792
        %v1815 = vrcp.pop %v1795
        %v1816 = vrcp.pop %v1798
        %v1817 = vrcp.pop %v1801
        %v1818 = vrcp.pop %v1804
        %v1819 = vrcp.pop %v1807
        %v1820 = vrcp.pop %v1810
        %v1821 = vrcp.pop %v1813
        %v1822 = vmul.f32 %v1775, %v1814
        %v1823 = vmul.f32 %v1777, %v1815
        %v1824 = vmul.f32 %v1779, %v1816
        %v1825 = vmul.f32 %v1781, %v1817
        %v1826 = vmul.f32 %v1783, %v1818
        %v1827 = vmul.f32 %v1785, %v1819
        %v1828 = vmul.f32 %v1787, %v1820
        %v1829 = vmul.f32 %v1789, %v1821
        %v1830 = vpack.c.bf16 %v1823, %v1822
        %v1831 = vpack.c.bf16 %v1825, %v1824
        %v1832 = vpack.c.bf16 %v1827, %v1826
        %v1833 = vpack.c.bf16 %v1829, %v1828
        %v1835 = vsel %vm1741, %v1830, 0
        %1837 = vmatprep.subr.bf16.mxu0 0
        %1838 = vmatpush1.bf16.msra.mxu0 %v1521
        %1839 = vmatprep.subr.bf16.mxu0 0
        %1840 = vmatpush1.bf16.msra.mxu0 %v1522
        %1841 = vmatprep.subr.bf16.mxu0 0
        %1842 = vmatpush1.bf16.msra.mxu0 0
        %1843 = vmatprep.subr.bf16.mxu0 0
        %1844 = vmatpush1.bf16.msra.mxu0 0
        %1845 = vmatprep.subr.bf16.mxu0 0
        %1846 = vmatpush1.bf16.msra.mxu0 0
        %1847 = vmatprep.subr.bf16.mxu0 0
        %1848 = vmatpush1.bf16.msra.mxu0 0
        %1849 = vmatprep.subr.bf16.mxu0 0
        %1850 = vmatpush1.bf16.msra.mxu0 0
        %1851 = vmatprep.subr.bf16.mxu0 0
        %1852 = vmatpush1.bf16.msra.mxu0 0
        %1853 = vmatprep.subr.bf16.mxu0 0
        %1854 = vmatpush1.bf16.msra.mxu0 0
        %1855 = vmatprep.subr.bf16.mxu0 0
        %1856 = vmatpush1.bf16.msra.mxu0 0
        %1857 = vmatprep.subr.bf16.mxu0 0
        %1858 = vmatpush1.bf16.msra.mxu0 0
        %1859 = vmatprep.subr.bf16.mxu0 0
        %1860 = vmatpush1.bf16.msra.mxu0 0
        %1861 = vmatprep.subr.bf16.mxu0 0
        %1862 = vmatpush1.bf16.msra.mxu0 0
        %1863 = vmatprep.subr.bf16.mxu0 0
        %1864 = vmatpush1.bf16.msra.mxu0 0
        %1865 = vmatprep.subr.bf16.mxu0 0
        %1866 = vmatpush1.bf16.msra.mxu0 0
        %1867 = vmatprep.subr.bf16.mxu0 0
        %1868 = vmatpush1.bf16.msra.mxu0 0
        %1869 = vmatprep.mubr.bf16.mxu0 0
        %1870 = vmatmul.mubr.bf16.gmra.mrb[0].mxu0 %v1835
        %v1871 = vpop.f32.mrb[0].mxu0
        %v1872 = vadd.f32 0.0, %v1871
        %v1873 = vpop.f32.mrb[0].mxu0
        %v1874 = vpop.f32.mrb[0].mxu0
        %v1875 = vadd.f32 0.0, %v1874
        %v1876 = vpop.f32.mrb[0].mxu0
        %1877 = vdwg.mxu0
        %v1879 = vsel %vm1741, %v1831, 0
        %1881 = vmatprep.subr.bf16.mxu0 0
        %1882 = vmatpush1.bf16.msra.mxu0 %v1523
        %1883 = vmatprep.subr.bf16.mxu0 0
        %1884 = vmatpush1.bf16.msra.mxu0 %v1524
        %1885 = vmatprep.subr.bf16.mxu0 0
        %1886 = vmatpush1.bf16.msra.mxu0 0
        %1887 = vmatprep.subr.bf16.mxu0 0
        %1888 = vmatpush1.bf16.msra.mxu0 0
        %1889 = vmatprep.subr.bf16.mxu0 0
        %1890 = vmatpush1.bf16.msra.mxu0 0
        %1891 = vmatprep.subr.bf16.mxu0 0
        %1892 = vmatpush1.bf16.msra.mxu0 0
        %1893 = vmatprep.subr.bf16.mxu0 0
        %1894 = vmatpush1.bf16.msra.mxu0 0
        %1895 = vmatprep.subr.bf16.mxu0 0
        %1896 = vmatpush1.bf16.msra.mxu0 0
        %1897 = vmatprep.subr.bf16.mxu0 0
        %1898 = vmatpush1.bf16.msra.mxu0 0
        %1899 = vmatprep.subr.bf16.mxu0 0
        %1900 = vmatpush1.bf16.msra.mxu0 0
        %1901 = vmatprep.subr.bf16.mxu0 0
        %1902 = vmatpush1.bf16.msra.mxu0 0
        %1903 = vmatprep.subr.bf16.mxu0 0
        %1904 = vmatpush1.bf16.msra.mxu0 0
        %1905 = vmatprep.subr.bf16.mxu0 0
        %1906 = vmatpush1.bf16.msra.mxu0 0
        %1907 = vmatprep.subr.bf16.mxu0 0
        %1908 = vmatpush1.bf16.msra.mxu0 0
        %1909 = vmatprep.subr.bf16.mxu0 0
        %1910 = vmatpush1.bf16.msra.mxu0 0
        %1911 = vmatprep.subr.bf16.mxu0 0
        %1912 = vmatpush1.bf16.msra.mxu0 0
        %1913 = vmatprep.mubr.bf16.mxu0 0
        %1914 = vmatmul.mubr.bf16.gmra.mrb[0].mxu0 %v1879
        %v1915 = vpop.f32.mrb[0].mxu0
        %v1916 = vadd.f32 0.0, %v1915
        %v1917 = vpop.f32.mrb[0].mxu0
        %v1918 = vpop.f32.mrb[0].mxu0
        %v1919 = vadd.f32 0.0, %v1918
        %v1920 = vpop.f32.mrb[0].mxu0
        %1921 = vdwg.mxu0
        %v1923 = vsel %vm1741, %v1832, 0
        %1925 = vmatprep.subr.bf16.mxu0 0
        %1926 = vmatpush1.bf16.msra.mxu0 %v1525
        %1927 = vmatprep.subr.bf16.mxu0 0
        %1928 = vmatpush1.bf16.msra.mxu0 %v1526
        %1929 = vmatprep.subr.bf16.mxu0 0
        %1930 = vmatpush1.bf16.msra.mxu0 0
        %1931 = vmatprep.subr.bf16.mxu0 0
        %1932 = vmatpush1.bf16.msra.mxu0 0
        %1933 = vmatprep.subr.bf16.mxu0 0
        %1934 = vmatpush1.bf16.msra.mxu0 0
        %1935 = vmatprep.subr.bf16.mxu0 0
        %1936 = vmatpush1.bf16.msra.mxu0 0
        %1937 = vmatprep.subr.bf16.mxu0 0
        %1938 = vmatpush1.bf16.msra.mxu0 0
        %1939 = vmatprep.subr.bf16.mxu0 0
        %1940 = vmatpush1.bf16.msra.mxu0 0
        %1941 = vmatprep.subr.bf16.mxu0 0
        %1942 = vmatpush1.bf16.msra.mxu0 0
        %1943 = vmatprep.subr.bf16.mxu0 0
        %1944 = vmatpush1.bf16.msra.mxu0 0
        %1945 = vmatprep.subr.bf16.mxu0 0
        %1946 = vmatpush1.bf16.msra.mxu0 0
        %1947 = vmatprep.subr.bf16.mxu0 0
        %1948 = vmatpush1.bf16.msra.mxu0 0
        %1949 = vmatprep.subr.bf16.mxu0 0
        %1950 = vmatpush1.bf16.msra.mxu0 0
        %1951 = vmatprep.subr.bf16.mxu0 0
        %1952 = vmatpush1.bf16.msra.mxu0 0
        %1953 = vmatprep.subr.bf16.mxu0 0
        %1954 = vmatpush1.bf16.msra.mxu0 0
        %1955 = vmatprep.subr.bf16.mxu0 0
        %1956 = vmatpush1.bf16.msra.mxu0 0
        %1957 = vmatprep.mubr.bf16.mxu0 0
        %1958 = vmatmul.mubr.bf16.gmra.mrb[0].mxu0 %v1923
        %v1959 = vpop.f32.mrb[0].mxu0
        %v1960 = vadd.f32 0.0, %v1959
        %v1961 = vpop.f32.mrb[0].mxu0
        %v1962 = vpop.f32.mrb[0].mxu0
        %v1963 = vadd.f32 0.0, %v1962
        %v1964 = vpop.f32.mrb[0].mxu0
        %1965 = vdwg.mxu0
        %v1967 = vsel %vm1741, %v1833, 0
        %1969 = vmatprep.subr.bf16.mxu0 0
        %1970 = vmatpush1.bf16.msra.mxu0 %v1527
        %1971 = vmatprep.subr.bf16.mxu0 0
        %1972 = vmatpush1.bf16.msra.mxu0 %v1528
        %1973 = vmatprep.subr.bf16.mxu0 0
        %1974 = vmatpush1.bf16.msra.mxu0 0
        %1975 = vmatprep.subr.bf16.mxu0 0
        %1976 = vmatpush1.bf16.msra.mxu0 0
        %1977 = vmatprep.subr.bf16.mxu0 0
        %1978 = vmatpush1.bf16.msra.mxu0 0
        %1979 = vmatprep.subr.bf16.mxu0 0
        %1980 = vmatpush1.bf16.msra.mxu0 0
        %1981 = vmatprep.subr.bf16.mxu0 0
        %1982 = vmatpush1.bf16.msra.mxu0 0
        %1983 = vmatprep.subr.bf16.mxu0 0
        %1984 = vmatpush1.bf16.msra.mxu0 0
        %1985 = vmatprep.subr.bf16.mxu0 0
        %1986 = vmatpush1.bf16.msra.mxu0 0
        %1987 = vmatprep.subr.bf16.mxu0 0
        %1988 = vmatpush1.bf16.msra.mxu0 0
        %1989 = vmatprep.subr.bf16.mxu0 0
        %1990 = vmatpush1.bf16.msra.mxu0 0
        %1991 = vmatprep.subr.bf16.mxu0 0
        %1992 = vmatpush1.bf16.msra.mxu0 0
        %1993 = vmatprep.subr.bf16.mxu0 0
        %1994 = vmatpush1.bf16.msra.mxu0 0
        %1995 = vmatprep.subr.bf16.mxu0 0
        %1996 = vmatpush1.bf16.msra.mxu0 0
        %1997 = vmatprep.subr.bf16.mxu0 0
        %1998 = vmatpush1.bf16.msra.mxu0 0
        %1999 = vmatprep.subr.bf16.mxu0 0
        %2000 = vmatpush1.bf16.msra.mxu0 0
        %2001 = vmatprep.mubr.bf16.mxu0 0
        %2002 = vmatmul.mubr.bf16.gmra.mrb[0].mxu0 %v1967
        %v2003 = vpop.f32.mrb[0].mxu0
        %v2004 = vadd.f32 0.0, %v2003
        %v2005 = vpop.f32.mrb[0].mxu0
        %v2006 = vpop.f32.mrb[0].mxu0
        %v2007 = vadd.f32 0.0, %v2006
        %v2008 = vpop.f32.mrb[0].mxu0
        %2009 = vdwg.mxu0
        %v2010 = vpack.c.bf16 %v1875, %v1872
        %v2011 = vld [vmem:[#allocation22] sm:$0xf]
        %v2012 = vpack.c.bf16 %v1919, %v1916
        %s2013 = scalar_lea.vmem [#allocation22], 4
        %v2014 = vld [vmem:[%s2013] sm:$0xf]
        %v2016 = vsel %vm1347, %v2012, 0
        %v2019 = vsel %vm1360, %v2014, 0
        %2021 = vmatprep.subr.bf16.mxu0 0
        %2022 = vmatpush1.bf16.msra.mxu0 %v2019
        %2023 = vmatprep.subr.bf16.mxu0 0
        %2024 = vmatpush1.bf16.msra.mxu0 0
        %2025 = vmatprep.subr.bf16.mxu0 0
        %2026 = vmatpush1.bf16.msra.mxu0 0
        %2027 = vmatprep.subr.bf16.mxu0 0
        %2028 = vmatpush1.bf16.msra.mxu0 0
        %2029 = vmatprep.subr.bf16.mxu0 0
        %2030 = vmatpush1.bf16.msra.mxu0 0
        %2031 = vmatprep.subr.bf16.mxu0 0
        %2032 = vmatpush1.bf16.msra.mxu0 0
        %2033 = vmatprep.subr.bf16.mxu0 0
        %2034 = vmatpush1.bf16.msra.mxu0 0
        %2035 = vmatprep.subr.bf16.mxu0 0
        %2036 = vmatpush1.bf16.msra.mxu0 0
        %2037 = vmatprep.subr.bf16.mxu0 0
        %2038 = vmatpush1.bf16.msra.mxu0 0
        %2039 = vmatprep.subr.bf16.mxu0 0
        %2040 = vmatpush1.bf16.msra.mxu0 0
        %2041 = vmatprep.subr.bf16.mxu0 0
        %2042 = vmatpush1.bf16.msra.mxu0 0
        %2043 = vmatprep.subr.bf16.mxu0 0
        %2044 = vmatpush1.bf16.msra.mxu0 0
        %2045 = vmatprep.subr.bf16.mxu0 0
        %2046 = vmatpush1.bf16.msra.mxu0 0
        %2047 = vmatprep.subr.bf16.mxu0 0
        %2048 = vmatpush1.bf16.msra.mxu0 0
        %2049 = vmatprep.subr.bf16.mxu0 0
        %2050 = vmatpush1.bf16.msra.mxu0 0
        %2051 = vmatprep.subr.bf16.mxu0 0
        %2052 = vmatpush1.bf16.msra.mxu0 0
        %2053 = vmatprep.mubr.bf16.mxu0 0
        %2054 = vmatmul.mubr.bf16.gmra.mrb[0].mxu0 %v2016
        %v2055 = vpop.f32.mrb[0].mxu0
        %v2056 = vadd.f32 0.0, %v2055
        %v2057 = vpop.f32.mrb[0].mxu0
        %v2058 = vpop.f32.mrb[0].mxu0
        %v2059 = vadd.f32 0.0, %v2058
        %v2060 = vpop.f32.mrb[0].mxu0
        %2061 = vdwg.mxu0
        %v2063 = vsel %vm1347, %v2010, 0
        %v2066 = vsel %vm1360, %v2011, 0
        %2068 = vmatprep.subr.bf16.mxu0 0
        %2069 = vmatpush1.bf16.msra.mxu0 %v2066
        %2070 = vmatprep.subr.bf16.mxu0 0
        %2071 = vmatpush1.bf16.msra.mxu0 0
        %2072 = vmatprep.subr.bf16.mxu0 0
        %2073 = vmatpush1.bf16.msra.mxu0 0
        %2074 = vmatprep.subr.bf16.mxu0 0
        %2075 = vmatpush1.bf16.msra.mxu0 0
        %2076 = vmatprep.subr.bf16.mxu0 0
        %2077 = vmatpush1.bf16.msra.mxu0 0
        %2078 = vmatprep.subr.bf16.mxu0 0
        %2079 = vmatpush1.bf16.msra.mxu0 0
        %2080 = vmatprep.subr.bf16.mxu0 0
        %2081 = vmatpush1.bf16.msra.mxu0 0
        %2082 = vmatprep.subr.bf16.mxu0 0
        %2083 = vmatpush1.bf16.msra.mxu0 0
        %2084 = vmatprep.subr.bf16.mxu0 0
        %2085 = vmatpush1.bf16.msra.mxu0 0
        %2086 = vmatprep.subr.bf16.mxu0 0
        %2087 = vmatpush1.bf16.msra.mxu0 0
        %2088 = vmatprep.subr.bf16.mxu0 0
        %2089 = vmatpush1.bf16.msra.mxu0 0
        %2090 = vmatprep.subr.bf16.mxu0 0
        %2091 = vmatpush1.bf16.msra.mxu0 0
        %2092 = vmatprep.subr.bf16.mxu0 0
        %2093 = vmatpush1.bf16.msra.mxu0 0
        %2094 = vmatprep.subr.bf16.mxu0 0
        %2095 = vmatpush1.bf16.msra.mxu0 0
        %2096 = vmatprep.subr.bf16.mxu0 0
        %2097 = vmatpush1.bf16.msra.mxu0 0
        %2098 = vmatprep.subr.bf16.mxu0 0
        %2099 = vmatpush1.bf16.msra.mxu0 0
        %2100 = vmatprep.mubr.bf16.mxu0 0
        %2101 = vmatmul.mubr.bf16.gmra.mrb[0].mxu0 %v2063
        %v2102 = vpop.f32.mrb[0].mxu0
        %v2103 = vadd.f32 %v2056, %v2102
        %v2104 = vpop.f32.mrb[0].mxu0
        %v2105 = vpop.f32.mrb[0].mxu0
        %v2106 = vadd.f32 %v2059, %v2105
        %v2107 = vpop.f32.mrb[0].mxu0
        %2108 = vdwg.mxu0
        %v2109 = vpack.c.bf16 %v1963, %v1960
        %s2110 = scalar_lea.vmem [#allocation22], 8
        %v2111 = vld [vmem:[%s2110] sm:$0xf]
        %v2113 = vsel %vm1347, %v2109, 0
        %v2116 = vsel %vm1360, %v2111, 0
        %2118 = vmatprep.subr.bf16.mxu0 0
        %2119 = vmatpush1.bf16.msra.mxu0 %v2116
        %2120 = vmatprep.subr.bf16.mxu0 0
        %2121 = vmatpush1.bf16.msra.mxu0 0
        %2122 = vmatprep.subr.bf16.mxu0 0
        %2123 = vmatpush1.bf16.msra.mxu0 0
        %2124 = vmatprep.subr.bf16.mxu0 0
        %2125 = vmatpush1.bf16.msra.mxu0 0
        %2126 = vmatprep.subr.bf16.mxu0 0
        %2127 = vmatpush1.bf16.msra.mxu0 0
        %2128 = vmatprep.subr.bf16.mxu0 0
        %2129 = vmatpush1.bf16.msra.mxu0 0
        %2130 = vmatprep.subr.bf16.mxu0 0
        %2131 = vmatpush1.bf16.msra.mxu0 0
        %2132 = vmatprep.subr.bf16.mxu0 0
        %2133 = vmatpush1.bf16.msra.mxu0 0
        %2134 = vmatprep.subr.bf16.mxu0 0
        %2135 = vmatpush1.bf16.msra.mxu0 0
        %2136 = vmatprep.subr.bf16.mxu0 0
        %2137 = vmatpush1.bf16.msra.mxu0 0
        %2138 = vmatprep.subr.bf16.mxu0 0
        %2139 = vmatpush1.bf16.msra.mxu0 0
        %2140 = vmatprep.subr.bf16.mxu0 0
        %2141 = vmatpush1.bf16.msra.mxu0 0
        %2142 = vmatprep.subr.bf16.mxu0 0
        %2143 = vmatpush1.bf16.msra.mxu0 0
        %2144 = vmatprep.subr.bf16.mxu0 0
        %2145 = vmatpush1.bf16.msra.mxu0 0
        %2146 = vmatprep.subr.bf16.mxu0 0
        %2147 = vmatpush1.bf16.msra.mxu0 0
        %2148 = vmatprep.subr.bf16.mxu0 0
        %2149 = vmatpush1.bf16.msra.mxu0 0
        %2150 = vmatprep.mubr.bf16.mxu0 0
        %2151 = vmatmul.mubr.bf16.gmra.mrb[0].mxu0 %v2113
        %v2152 = vpop.f32.mrb[0].mxu0
        %v2153 = vadd.f32 0.0, %v2152
        %v2154 = vpop.f32.mrb[0].mxu0
        %v2155 = vpop.f32.mrb[0].mxu0
        %v2156 = vadd.f32 0.0, %v2155
        %v2157 = vpop.f32.mrb[0].mxu0
        %2158 = vdwg.mxu0
        %v2159 = vadd.f32 %v2103, %v2153
        %v2160 = vadd.f32 %v2106, %v2156
        %v2161 = vpack.c.bf16 %v2007, %v2004
        %s2162 = scalar_lea.vmem [#allocation22], 12
        %v2163 = vld [vmem:[%s2162] sm:$0xf]
        %v2165 = vsel %vm1347, %v2161, 0
        %v2168 = vsel %vm1360, %v2163, 0
        %2170 = vmatprep.subr.bf16.mxu0 0
        %2171 = vmatpush1.bf16.msra.mxu0 %v2168
        %2172 = vmatprep.subr.bf16.mxu0 0
        %2173 = vmatpush1.bf16.msra.mxu0 0
        %2174 = vmatprep.subr.bf16.mxu0 0
        %2175 = vmatpush1.bf16.msra.mxu0 0
        %2176 = vmatprep.subr.bf16.mxu0 0
        %2177 = vmatpush1.bf16.msra.mxu0 0
        %2178 = vmatprep.subr.bf16.mxu0 0
        %2179 = vmatpush1.bf16.msra.mxu0 0
        %2180 = vmatprep.subr.bf16.mxu0 0
        %2181 = vmatpush1.bf16.msra.mxu0 0
        %2182 = vmatprep.subr.bf16.mxu0 0
        %2183 = vmatpush1.bf16.msra.mxu0 0
        %2184 = vmatprep.subr.bf16.mxu0 0
        %2185 = vmatpush1.bf16.msra.mxu0 0
        %2186 = vmatprep.subr.bf16.mxu0 0
        %2187 = vmatpush1.bf16.msra.mxu0 0
        %2188 = vmatprep.subr.bf16.mxu0 0
        %2189 = vmatpush1.bf16.msra.mxu0 0
        %2190 = vmatprep.subr.bf16.mxu0 0
        %2191 = vmatpush1.bf16.msra.mxu0 0
        %2192 = vmatprep.subr.bf16.mxu0 0
        %2193 = vmatpush1.bf16.msra.mxu0 0
        %2194 = vmatprep.subr.bf16.mxu0 0
        %2195 = vmatpush1.bf16.msra.mxu0 0
        %2196 = vmatprep.subr.bf16.mxu0 0
        %2197 = vmatpush1.bf16.msra.mxu0 0
        %2198 = vmatprep.subr.bf16.mxu0 0
        %2199 = vmatpush1.bf16.msra.mxu0 0
        %2200 = vmatprep.subr.bf16.mxu0 0
        %2201 = vmatpush1.bf16.msra.mxu0 0
        %2202 = vmatprep.mubr.bf16.mxu0 0
        %2203 = vmatmul.mubr.bf16.gmra.mrb[0].mxu0 %v2165
        %v2204 = vpop.f32.mrb[0].mxu0
        %v2205 = vadd.f32 0.0, %v2204
        %v2206 = vpop.f32.mrb[0].mxu0
        %v2207 = vpop.f32.mrb[0].mxu0
        %v2208 = vadd.f32 0.0, %v2207
        %v2209 = vpop.f32.mrb[0].mxu0
        %2210 = vdwg.mxu0
        %v2211 = vadd.f32 %v2159, %v2205
        %v2212 = vadd.f32 %v2160, %v2208
        %v2213 = vld [vmem:[#allocation24] sm:$0x1]
        %v2215 = vlaneseq
        %v2216 = vshrl.u32 %v2215, 7
        %v2217 = vsub.s32 0, %v2216
        %v2218 = vrot.slane %v2213, %v2217
        %v2220 = vadd.f32 %v2211, %v2218
        %v2221 = vadd.f32 %v2212, %v2218
        %2222 = vst.msk [vmem:[%s736] sm:$0xff] %vm1741, %v2220
        %2223 = vst.msk [vmem:[%s736 + $0x8] sm:$0xff] %vm1741, %v2221
        %s2224 = sand.u32 %s357, 1
        %s2225 = scalar_lea.sflag [#allocation6], %s2224
        %s2226 = sand.u32 %s357, 1
        %s2227 = smul.addr %s2226, 16
        %s2228 = scalar_lea.vmem [#allocation25], %s2227
        // Predicated region
        $region129: #{tpu_custom_call.1} parent=71 // pred_check
          %p2229 = pneg %p367
        $region130: #{tpu_custom_call.1} parent=71 // pred_check_branch
          %2231 = sbr.rel (%p2229) target = $region132
        $region131: #{tpu_custom_call.1} parent=71 // pred_region
          %s2232 = smul.u32 2, %s45
          %s2234 = ssub.s32 256, 256
          %2235 = vsyncadd %s2225, %s2234
          %s2236 = smul.addr %s44, 4
          %s2237 = sadd.s32 %s2232, %s2236
          %s2238 = smul.addr %s2237, 128
          %s2239 = scalar_lea.hbm %s13, %s2238
          %s2240 = sshll.u32 %s2228, 4
          %s2241 = int_to_ptr.vmem [resolvable:$true] %s2240
          %2246 = dma.vmem_to_hbm [thread:$0]  %s2241, 256, %s2239, %s2225, 128, 128, 8
        $region132: #{tpu_custom_call.1} parent=71 // pred_fallthru
          _
      $region72: #{tpu_custom_call.1} parent=5 // pred_fallthru
        _
      %p2247 = scmp.le.s32.totalorder 2, %s35
      // Predicated region
      $region133: #{tpu_custom_call.1} parent=5 // pred_check
        %p2248 = pneg %p2247
      $region134: #{tpu_custom_call.1} parent=5 // pred_check_branch
        %2250 = sbr.rel (%p2248) target = $region136
      $region135: #{tpu_custom_call.1} parent=5 // pred_region
        %s2251 = ssub.s32 %s35, 2
        // Predicated region
        $region137: #{tpu_custom_call.1} parent=135 // pred_check
          %p2252 = pneg %p373
        $region138: #{tpu_custom_call.1} parent=135 // pred_check_branch
          %2254 = sbr.rel (%p2252) target = $region140
        $region139: #{tpu_custom_call.1} parent=135 // pred_region
          %s2255 = sand.u32 %s358, 1
          %s2256 = scalar_lea.sflag [#allocation6], %s2255
          %s2257 = sand.u32 %s358, 1
          %s2258 = smul.addr %s2257, 16
          %s2259 = scalar_lea.vmem [#allocation25], %s2258
          %2260 = dma.done %s2256, 256
        $region140: #{tpu_custom_call.1} parent=135 // pred_fallthru
          _
      $region136: #{tpu_custom_call.1} parent=5 // pred_fallthru
        _
    $region6: #{tpu_custom_call.1} parent=1 // loop_footer
      %s39 = sadd.s32 1, %s35
    $region7: #{tpu_custom_call.1} parent=1 // loop_footer_branch
      %34 = sbr.rel target = $region3
    $region8: #{tpu_custom_call.1} parent=1 // loop_exit
      _
    %2261 = vsyncpa [#allocation5], 1
    %s2262 = scalar_lea.sflag [#allocation5], 1
    %2263 = vsyncpa %s2262, 1
    %2264 = vsyncpa [#allocation8], 1
    %s2265 = scalar_lea.sflag [#allocation8], 1
    %2266 = vsyncpa %s2265, 1
    %2267 = vsyncpa [#allocation11], 1
    %s2268 = scalar_lea.sflag [#allocation11], 1
    %2269 = vsyncpa %s2268, 1
    %2270 = vsyncpa [#allocation14], 1
    %2271 = vsyncpa [#allocation17], 1
    %2272 = vsyncpa [#allocation20], 1
    %2273 = vsyncpa [#allocation23], 1
    %2274 = vsyncpa [#allocation6], 1
    %s2275 = scalar_lea.sflag [#allocation6], 1
    %2276 = vsyncpa %s2275, 1

</llo_original>
